<compile_context>
chip_gen: v7x
topology: tpu7x:2x2x1
jax: 0.10.0
libtpu: 0.0.40
codegen_flags: <defaults>
</compile_context>

<pallas_src>
import functools

import jax
import jax.numpy as jnp
import numpy as np
from jax.experimental import pallas as pl
from jax.experimental.pallas import tpu as pltpu

# ----------------------------- config (from __init__) ------------------------
CLASSIFICATION_LAMBDA = 2.0
USE_FOCAL = True
FOCAL_LOSS_ALPHA = 0.25
FOCAL_LOSS_GAMMA = 2.0
USE_GIOU = True
GIOU_LAMBDA = 2.0
PROJECTION_LAMBDA = 1.0
NULL_CLASS = False      # no-op in the reference forward

BIG = 1.0e8


def _round_up(x, m):
    return (x + m - 1) // m * m


# ----------------------------- Pallas kernel ---------------------------------
def _loss_kernel(ne_ref, pk_ref, pkt_ref, prop_ref, pred_ref, logit_ref,
                 out_ref, *, classification_lambda, focal_alpha, focal_gamma,
                 giou_lambda, projection_lambda):
    b = pl.program_id(0)
    ne = ne_ref[b].astype(jnp.float32)        # scalar {0., 1.}: image has any GT

    pk = pk_ref[0]         # (G, 8)    cols: x1, y1, x2, y2, mask, 0, 0, 0
    vt = pkt_ref[0]        # (8+C, G)  rows: x1,y1,x2,y2,mask,0,0,0, onehot_0..C-1
    prop = prop_ref[0]     # (4, AT)   proposal boxes, coordinate-major
    pred = pred_ref[0]     # (4, AT)   predicted boxes, coordinate-major
    logits = logit_ref[0].astype(jnp.float32)  # (C, AT), class-major (bf16 ok)

    G = pk.shape[0]
    AT = prop.shape[1]
    C = logits.shape[0]

    gx1, gy1, gx2, gy2 = pk[:, 0:1], pk[:, 1:2], pk[:, 2:3], pk[:, 3:4]
    gmask = pk[:, 4:5]                                            # (G, 1)
    px1, py1, px2, py2 = prop[0:1, :], prop[1:2, :], prop[2:3, :], prop[3:4, :]
    qx1, qy1, qx2, qy2 = pred[0:1, :], pred[1:2, :], pred[2:3, :], pred[3:4, :]

    # --- proposal <-> GT L1 distance matrix, masked (G, AT) -------------------
    prop_d = (jnp.abs(gx1 - px1) + jnp.abs(gy1 - py1)
              + jnp.abs(gx2 - px2) + jnp.abs(gy2 - py2))
    prop_dm = jnp.where(gmask > 0.5, prop_d, BIG)

    # --- argmin over GT (first-min tie-break, like torch.min) -----------------
    g_iota = jax.lax.broadcasted_iota(jnp.int32, (G, AT), 0)
    min_val = jnp.min(prop_dm, axis=0, keepdims=True)             # (1, AT)
    closest = jnp.min(jnp.where(prop_dm == min_val, g_iota, G),
                      axis=0, keepdims=True)                      # (1, AT) int32
    oh = (g_iota == closest).astype(jnp.float32)                  # (G, AT) one-hot

    # --- single MXU matmul gathers coords + mask + class one-hot at once ------
    # HIGHEST precision keeps the one-hot gather (and the 0/1 mask & class
    # one-hot rows) exact for f32 values.  Do not lower this precision.
    gathered = jnp.dot(vt, oh, preferred_element_type=jnp.float32,
                       precision=jax.lax.Precision.HIGHEST)       # (8+C, AT)
    cx1, cy1 = gathered[0:1, :], gathered[1:2, :]
    cx2, cy2 = gathered[2:3, :], gathered[3:4, :]
    mask_g = gathered[4:5, :]                                     # (1, AT)
    t = gathered[8:8 + C, :]                                      # (C, AT) one-hot
    valid_g = mask_g > 0.5

    # --- projection loss on (1, AT) vectors ------------------------------------
    proj = (jnp.abs(qx1 - cx1) + jnp.abs(qy1 - cy1)
            + jnp.abs(qx2 - cx2) + jnp.abs(qy2 - cy2))
    proj = jnp.where(valid_g, proj, 0.0) * projection_lambda

    # --- GIoU(pred, closest GT) on (1, AT) vectors ------------------------------
    area_c = (cx2 - cx1) * (cy2 - cy1)
    area_q = (qx2 - qx1) * (qy2 - qy1)
    iw = jnp.maximum(jnp.minimum(cx2, qx2) - jnp.maximum(cx1, qx1), 0.0)
    ih = jnp.maximum(jnp.minimum(cy2, qy2) - jnp.maximum(cy1, qy1), 0.0)
    inter = iw * ih
    union = area_c + area_q - inter
    iou = inter / union
    ew = jnp.maximum(jnp.maximum(cx2, qx2) - jnp.minimum(cx1, qx1), 0.0)
    eh = jnp.maximum(jnp.maximum(cy2, qy2) - jnp.minimum(cy1, qy1), 0.0)
    enclose = ew * eh
    giou = iou - (enclose - union) / enclose
    # invalid closest GT -> BIG, exactly like torch's gather of the masked matrix
    giou = jnp.where(valid_g, giou, BIG) * giou_lambda

    # --- sigmoid focal classification loss (C, AT) -> (1, AT) -------------------
    # TODO(synk): for very large C (>=32) chunk this section over class blocks
    # (lax.fori_loop, unroll=True) to bound live (C, AT) temporaries.
    x = logits
    e = jnp.exp(-jnp.abs(x))                     # single EUP exp per element
    log1pe = jnp.log(1.0 + e)                    # single EUP log per element
    sp_pos = jnp.maximum(x, 0.0) + log1pe        # softplus(x)
    ce = sp_pos - t * x                          # = t*softplus(-x) + (1-t)*softplus(x)
    p = jnp.where(x >= 0.0, 1.0, e) / (1.0 + e)  # sigmoid(x), reusing e
    # 1 - p_t  where  p_t = p*t + (1-p)*(1-t)   (fixed: previously double-flipped)
    one_minus_pt = p + t * (1.0 - 2.0 * p)
    if focal_gamma == 2.0:
        mod = one_minus_pt * one_minus_pt
    else:
        mod = one_minus_pt ** focal_gamma
    alpha_t = (1.0 - focal_alpha) + t * (2.0 * focal_alpha - 1.0)
    focal = alpha_t * mod * ce
    cls_loss = jnp.mean(focal, axis=0, keepdims=True)             # (1, AT)
    cls_loss = cls_loss * (ne * classification_lambda)            # no-GT image -> 0

    # --- packed output rows: 0 = classification, 1 = projection, 2 = giou -----
    out_ref[0] = jnp.concatenate([cls_loss, proj, giou], axis=0)  # one (3, AT) store


# ----------------------------- wrapper ----------------------------------------
@functools.partial(jax.jit, static_argnames=("a_tile",))
def detection_losses_pallas(gt_padded, gt_mask, gt_cls, gt_nonempty,
                            prop_boxes, pred_boxes, class_logits_cm,
                            a_tile=512):
    """Returns (classification_loss, projection_loss, giou_loss), each (N, A).

    class_logits_cm is CLASS-MAJOR (N, C, A); it is consumed in its native
    dtype (pass bf16 on mem-bound v5e — loss math stays f32 in-kernel).
    a_tile: anchor tile (multiple of 128). 512 is a good default; 1024 works
    well in v5e/v6e's 128 MiB VMEM; keep 512-1024 on v7x (64 MiB/TC).
    """
    N, G, _ = gt_padded.shape
    _, A, _ = prop_boxes.shape
    C = class_logits_cm.shape[1]

    f32 = jnp.float32

    # Lane-dense anchor tile; no HBM padding copy — the grid handles the ragged
    # last block and outputs are produced directly at (N, 3, A).
    at = min(_round_up(a_tile, 128), _round_up(A, 128))
    # Keep >= 2 grid steps so both TensorCores get work on a 2-TC chip (v7x).
    while at > 128 and N * pl.cdiv(A, at) < 2:
        at = _round_up(max(at // 2, 128), 128)
    g_pad = max(_round_up(G, 8), 8)

    prop_t = jnp.transpose(prop_boxes, (0, 2, 1)).astype(f32)     # (N, 4, A), tiny
    pred_t = jnp.transpose(pred_boxes, (0, 2, 1)).astype(f32)

    # Packed per-image GT tables (tiny): (G, 8) for the distance matrix and
    # (8+C, G) so one MXU matmul gathers coords, mask AND the class one-hot.
    gt_f = gt_padded.astype(f32)
    mask_f = gt_mask.astype(f32)
    pk = jnp.zeros((N, g_pad, 8), f32)
    pk = pk.at[:, :G, 0:4].set(gt_f)
    pk = pk.at[:, :G, 4].set(mask_f)

    cls_oh = jax.nn.one_hot(gt_cls, C, dtype=f32)                 # (N, G, C)
    pkt = jnp.zeros((N, 8 + C, g_pad), f32)
    pkt = pkt.at[:, 0:4, :G].set(jnp.transpose(gt_f, (0, 2, 1)))
    pkt = pkt.at[:, 4, :G].set(mask_f)
    pkt = pkt.at[:, 8:8 + C, :G].set(jnp.transpose(cls_oh, (0, 2, 1)))

    ne = gt_nonempty.astype(jnp.int32)                            # (N,) SMEM prefetch

    kernel = functools.partial(
        _loss_kernel,
        classification_lambda=CLASSIFICATION_LAMBDA,
        focal_alpha=FOCAL_LOSS_ALPHA,
        focal_gamma=FOCAL_LOSS_GAMMA,
        giou_lambda=GIOU_LAMBDA,
        projection_lambda=PROJECTION_LAMBDA,
    )

    gt_map = lambda b, j, ne_ref: (b, 0, 0)   # GT blocks stay resident across A tiles
    a_map = lambda b, j, ne_ref: (b, 0, j)

    out = pl.pallas_call(
        kernel,
        out_shape=jax.ShapeDtypeStruct((N, 3, A), f32),
        grid_spec=pltpu.PrefetchScalarGridSpec(
            num_scalar_prefetch=1,
            grid=(N, pl.cdiv(A, at)),
            in_specs=[
                pl.BlockSpec((1, g_pad, 8), gt_map),       # packed GT table (G, 8)
                pl.BlockSpec((1, 8 + C, g_pad), gt_map),   # packed GT^T + class one-hot
                pl.BlockSpec((1, 4, at), a_map),           # proposal boxes (coord-major)
                pl.BlockSpec((1, 4, at), a_map),           # pred boxes (coord-major)
                pl.BlockSpec((1, C, at), a_map),           # class logits (class-major)
            ],
            out_specs=pl.BlockSpec((1, 3, at), a_map),     # rows: cls / proj / giou
        ),
        compiler_params=pltpu.CompilerParams(
            dimension_semantics=("parallel", "parallel"),
            # Actual footprint is tiny (< a few MiB); 32 MiB leaves plenty of
            # headroom on v7x's 64 MiB/TC physical VMEM.
            vmem_limit_bytes=32 * 1024 * 1024,
        ),
    )(ne, pk, pkt, prop_t, pred_t, class_logits_cm)

    return out[:, 0, :], out[:, 1, :], out[:, 2, :]


# ----------------------------- pure-JAX reference -----------------------------
def detection_losses_ref(gt_padded, gt_mask, gt_cls, gt_nonempty,
                         prop_boxes, pred_boxes, class_logits):
    def box_dist(b1, b2):  # (N,A,4), (N,G,4) -> (N,A,G)
        return jnp.abs(b1[:, :, None, :] - b2[:, None, :, :]).sum(-1)

    N, A, _ = prop_boxes.shape
    C = class_logits.shape[-1]
    mask = gt_mask.astype(bool)

    prop_d = box_dist(prop_boxes, gt_padded)
    prop_dm = jnp.where(mask[:, None, :], prop_d, BIG)
    closest = jnp.argmin(prop_dm, axis=-1)                              # (N, A)

    pred_d = box_dist(pred_boxes, gt_padded)
    pred_dm = jnp.where(mask[:, None, :], pred_d, BIG)
    proj = jnp.take_along_axis(pred_dm, closest[..., None], -1)[..., 0]
    mask_g = jnp.take_along_axis(mask, closest, 1)
    proj = jnp.where(mask_g, proj, 0.0) * PROJECTION_LAMBDA

    # GIoU
    b1 = pred_boxes[:, :, None, :]
    b2 = gt_padded[:, None, :, :]
    area1 = (b1[..., 2] - b1[..., 0]) * (b1[..., 3] - b1[..., 1])
    area2 = (b2[..., 2] - b2[..., 0]) * (b2[..., 3] - b2[..., 1])
    iw = jnp.maximum(jnp.minimum(b1[..., 2], b2[..., 2]) - jnp.maximum(b1[..., 0], b2[..., 0]), 0.0)
    ih = jnp.maximum(jnp.minimum(b1[..., 3], b2[..., 3]) - jnp.maximum(b1[..., 1], b2[..., 1]), 0.0)
    inter = iw * ih
    union = area1 + area2 - inter
    iou = inter / union
    ew = jnp.maximum(jnp.maximum(b1[..., 2], b2[..., 2]) - jnp.minimum(b1[..., 0], b2[..., 0]), 0.0)
    eh = jnp.maximum(jnp.maximum(b1[..., 3], b2[..., 3]) - jnp.minimum(b1[..., 1], b2[..., 1]), 0.0)
    enclose = ew * eh
    giou = iou - (enclose - union) / enclose
    giou_m = jnp.where(mask[:, None, :], giou, BIG)
    giou_loss = jnp.take_along_axis(giou_m, closest[..., None], -1)[..., 0] * GIOU_LAMBDA

    ne = gt_nonempty.astype(bool)
    target = jnp.where(ne[:, None], jnp.take_along_axis(gt_cls, closest, 1), 0)  # (N, A)
    t = jax.nn.one_hot(target, C + 1, dtype=jnp.float32)[..., :C]                # (N, A, C)
    x = class_logits.astype(jnp.float32)
    log_term = jnp.log(1.0 + jnp.exp(-jnp.abs(x)))
    sp_pos = jnp.maximum(x, 0.0) + log_term
    sp_neg = jnp.maximum(-x, 0.0) + log_term
    ce = t * sp_neg + (1.0 - t) * sp_pos
    p = 1.0 / (1.0 + jnp.exp(-x))
    p_t = p * t + (1.0 - p) * (1.0 - t)
    mod = (1.0 - p_t) * (1.0 - p_t)
    alpha_t = FOCAL_LOSS_ALPHA * t + (1.0 - FOCAL_LOSS_ALPHA) * (1.0 - t)
    cls_loss = (alpha_t * mod * ce).mean(-1)
    cls_loss = jnp.where(ne[:, None], cls_loss, 0.0) * CLASSIFICATION_LAMBDA
    return cls_loss, proj, giou_loss


# ----------------------------- driver ----------------------------------------
def _make_boxes(key, n):
    k1, k2 = jax.random.split(key)
    xy = jax.random.uniform(k1, (n, 2), minval=0.0, maxval=10.0)
    wh = jax.random.uniform(k2, (n, 2), minval=1.0, maxval=5.0)
    return jnp.concatenate([xy, xy + wh], axis=-1)


if __name__ == "__main__":
    key = jax.random.PRNGKey(0)
    N, A, C = 2, 200, 8
    gt_counts = [3, 0]                 # second image has no GT (empty path)
    max_gt = max(max(gt_counts), 1)    # = 3

    keys = jax.random.split(key, 8)
    prop_boxes = jnp.stack([_make_boxes(keys[0], A), _make_boxes(keys[1], A)])   # (N, A, 4)
    pred_boxes = jnp.stack([_make_boxes(keys[2], A), _make_boxes(keys[3], A)])   # (N, A, 4)
    # Producer emits class-major logits (N, C, A); anchor-major view only for the ref.
    class_logits_cm = jax.random.normal(keys[4], (N, C, A), dtype=jnp.float32)   # (N, C, A)
    class_logits = jnp.transpose(class_logits_cm, (0, 2, 1))                     # (N, A, C)

    # Pad ragged per-image GT boxes / classes (host-side glue, like the torch loop).
    gt_padded = np.zeros((N, max_gt, 4), dtype=np.float32)
    gt_mask = np.zeros((N, max_gt), dtype=np.float32)
    gt_cls = np.zeros((N, max_gt), dtype=np.int32)
    gt_nonempty = np.zeros((N,), dtype=np.float32)
    gt_box_keys = jax.random.split(keys[5], N)
    gt_cls_keys = jax.random.split(keys[6], N)
    for i, cnt in enumerate(gt_counts):
        if cnt > 0:
            gt_padded[i, :cnt] = np.asarray(_make_boxes(gt_box_keys[i], cnt))
            gt_mask[i, :cnt] = 1.0
            gt_cls[i, :cnt] = np.asarray(
                jax.random.randint(gt_cls_keys[i], (cnt,), 0, C))
            gt_nonempty[i] = 1.0

    gt_padded = jnp.asarray(gt_padded)
    gt_mask = jnp.asarray(gt_mask)
    gt_cls = jnp.asarray(gt_cls)
    gt_nonempty = jnp.asarray(gt_nonempty)

    # a_tile=128 exercises multiple A tiles (and a ragged last block) at this
    # small test size; production sizes would use 512-1024.
    cls_l, proj_l, giou_l = detection_losses_pallas(
        gt_padded, gt_mask, gt_cls, gt_nonempty,
        prop_boxes, pred_boxes, class_logits_cm, a_tile=128)
    jax.block_until_ready((cls_l, proj_l, giou_l))

    cls_r, proj_r, giou_r = detection_losses_ref(
        gt_padded, gt_mask, gt_cls, gt_nonempty,
        prop_boxes, pred_boxes, class_logits)

    np.testing.assert_allclose(np.asarray(cls_l), np.asarray(cls_r), rtol=1e-4, atol=1e-5)
    np.testing.assert_allclose(np.asarray(proj_l), np.asarray(proj_r), rtol=1e-4, atol=1e-5)
    np.testing.assert_allclose(np.asarray(giou_l), np.asarray(giou_r), rtol=1e-4, atol=1e-4)
    assert np.isfinite(np.asarray(cls_l)).all()
    assert np.isfinite(np.asarray(proj_l)).all()
    assert np.isfinite(np.asarray(giou_l)).all()

    # TODO(synk): the torch module's in-place mutation of each input dict's
    # `loss_dict` (host-side Python accumulation + per-image isfinite asserts)
    # has no Pallas equivalent; the kernel returns the (N, A) loss arrays.
    print("KERNEL_OK")
</pallas_src>

<mosaic_0001>
module attributes {stable_mosaic.version = 11 : i64} {
  func.func @_loss_kernel(%arg0: i32, %arg1: i32, %arg2: memref<2xi32, #tpu.memory_space<smem>>, %arg3: memref<1x8x8xf32, #tpu.memory_space<vmem>>, %arg4: memref<1x16x8xf32, #tpu.memory_space<vmem>>, %arg5: memref<1x4x128xf32, #tpu.memory_space<vmem>>, %arg6: memref<1x4x128xf32, #tpu.memory_space<vmem>>, %arg7: memref<1x8x128xf32, #tpu.memory_space<vmem>>, %arg8: memref<1x3x128xf32, #tpu.memory_space<vmem>>) attributes {dimension_semantics = [#tpu.dimension_semantics<parallel>, #tpu.dimension_semantics<parallel>], iteration_bounds = array<i64: 2, 2>, scalar_prefetch = 1 : i64, scratch_operands = 0 : i64, tpu.core_type = #tpu.core_type<tc>, window_params = [{transform_indices = @transform_0, window_bounds = array<i64: 1, 8, 8>}, {transform_indices = @transform_1, window_bounds = array<i64: 1, 16, 8>}, {transform_indices = @transform_2, window_bounds = array<i64: 1, 4, 128>}, {transform_indices = @transform_3, window_bounds = array<i64: 1, 4, 128>}, {transform_indices = @transform_4, window_bounds = array<i64: 1, 8, 128>}, {transform_indices = @transform_5, window_bounds = array<i64: 1, 3, 128>}]} {
    %0 = arith.index_cast %arg0 : i32 to index
    %1 = memref.load %arg2[%0] : memref<2xi32, #tpu.memory_space<smem>>
    %2 = arith.sitofp %1 : i32 to f32
    %c0 = arith.constant 0 : index
    %c0_0 = arith.constant 0 : index
    %c0_1 = arith.constant 0 : index
    %3 = vector.load %arg3[%c0, %c0_0, %c0_1] : memref<1x8x8xf32, #tpu.memory_space<vmem>>, vector<1x8x8xf32>
    %4 = vector.shape_cast %3 : vector<1x8x8xf32> to vector<8x8xf32>
    %c0_2 = arith.constant 0 : index
    %c0_3 = arith.constant 0 : index
    %c0_4 = arith.constant 0 : index
    %5 = vector.load %arg4[%c0_2, %c0_3, %c0_4] : memref<1x16x8xf32, #tpu.memory_space<vmem>>, vector<1x16x8xf32>
    %6 = vector.shape_cast %5 : vector<1x16x8xf32> to vector<16x8xf32>
    %c0_5 = arith.constant 0 : index
    %c0_6 = arith.constant 0 : index
    %c0_7 = arith.constant 0 : index
    %7 = vector.load %arg5[%c0_5, %c0_6, %c0_7] : memref<1x4x128xf32, #tpu.memory_space<vmem>>, vector<1x4x128xf32>
    %8 = vector.shape_cast %7 : vector<1x4x128xf32> to vector<4x128xf32>
    %c0_8 = arith.constant 0 : index
    %c0_9 = arith.constant 0 : index
    %c0_10 = arith.constant 0 : index
    %9 = vector.load %arg6[%c0_8, %c0_9, %c0_10] : memref<1x4x128xf32, #tpu.memory_space<vmem>>, vector<1x4x128xf32>
    %10 = vector.shape_cast %9 : vector<1x4x128xf32> to vector<4x128xf32>
    %c0_11 = arith.constant 0 : index
    %c0_12 = arith.constant 0 : index
    %c0_13 = arith.constant 0 : index
    %11 = vector.load %arg7[%c0_11, %c0_12, %c0_13] : memref<1x8x128xf32, #tpu.memory_space<vmem>>, vector<1x8x128xf32>
    %12 = vector.shape_cast %11 : vector<1x8x128xf32> to vector<8x128xf32>
    %13 = vector.extract_strided_slice %4 {offsets = [0, 0], sizes = [8, 1], strides = [1, 1]} : vector<8x8xf32> to vector<8x1xf32>
    %14 = vector.extract_strided_slice %4 {offsets = [0, 1], sizes = [8, 1], strides = [1, 1]} : vector<8x8xf32> to vector<8x1xf32>
    %15 = vector.extract_strided_slice %4 {offsets = [0, 2], sizes = [8, 1], strides = [1, 1]} : vector<8x8xf32> to vector<8x1xf32>
    %16 = vector.extract_strided_slice %4 {offsets = [0, 3], sizes = [8, 1], strides = [1, 1]} : vector<8x8xf32> to vector<8x1xf32>
    %17 = vector.extract_strided_slice %4 {offsets = [0, 4], sizes = [8, 1], strides = [1, 1]} : vector<8x8xf32> to vector<8x1xf32>
    %18 = vector.extract_strided_slice %8 {offsets = [0, 0], sizes = [1, 128], strides = [1, 1]} : vector<4x128xf32> to vector<1x128xf32>
    %19 = vector.extract_strided_slice %8 {offsets = [1, 0], sizes = [1, 128], strides = [1, 1]} : vector<4x128xf32> to vector<1x128xf32>
    %20 = vector.extract_strided_slice %8 {offsets = [2, 0], sizes = [1, 128], strides = [1, 1]} : vector<4x128xf32> to vector<1x128xf32>
    %21 = vector.extract_strided_slice %8 {offsets = [3, 0], sizes = [1, 128], strides = [1, 1]} : vector<4x128xf32> to vector<1x128xf32>
    %22 = vector.extract_strided_slice %10 {offsets = [0, 0], sizes = [1, 128], strides = [1, 1]} : vector<4x128xf32> to vector<1x128xf32>
    %23 = vector.extract_strided_slice %10 {offsets = [1, 0], sizes = [1, 128], strides = [1, 1]} : vector<4x128xf32> to vector<1x128xf32>
    %24 = vector.extract_strided_slice %10 {offsets = [2, 0], sizes = [1, 128], strides = [1, 1]} : vector<4x128xf32> to vector<1x128xf32>
    %25 = vector.extract_strided_slice %10 {offsets = [3, 0], sizes = [1, 128], strides = [1, 1]} : vector<4x128xf32> to vector<1x128xf32>
    %26 = vector.broadcast %13 : vector<8x1xf32> to vector<8x128xf32>
    %27 = vector.broadcast %18 : vector<1x128xf32> to vector<8x128xf32>
    %28 = arith.subf %26, %27 : vector<8x128xf32>
    %29 = math.absf %28 : vector<8x128xf32>
    %30 = vector.broadcast %14 : vector<8x1xf32> to vector<8x128xf32>
    %31 = vector.broadcast %19 : vector<1x128xf32> to vector<8x128xf32>
    %32 = arith.subf %30, %31 : vector<8x128xf32>
    %33 = math.absf %32 : vector<8x128xf32>
    %34 = arith.addf %29, %33 : vector<8x128xf32>
    %35 = vector.broadcast %15 : vector<8x1xf32> to vector<8x128xf32>
    %36 = vector.broadcast %20 : vector<1x128xf32> to vector<8x128xf32>
    %37 = arith.subf %35, %36 : vector<8x128xf32>
    %38 = math.absf %37 : vector<8x128xf32>
    %39 = arith.addf %34, %38 : vector<8x128xf32>
    %40 = vector.broadcast %16 : vector<8x1xf32> to vector<8x128xf32>
    %41 = vector.broadcast %21 : vector<1x128xf32> to vector<8x128xf32>
    %42 = arith.subf %40, %41 : vector<8x128xf32>
    %43 = math.absf %42 : vector<8x128xf32>
    %44 = arith.addf %39, %43 : vector<8x128xf32>
    %cst = arith.constant 5.000000e-01 : f32
    %45 = vector.broadcast %cst : f32 to vector<8x1xf32>
    %46 = arith.cmpf ogt, %17, %45 : vector<8x1xf32>
    %cst_14 = arith.constant 1.000000e+08 : f32
    %47 = vector.shape_cast %46 : vector<8x1xi1> to vector<8x1xi1>
    %48 = vector.broadcast %47 : vector<8x1xi1> to vector<8x128xi1>
    %49 = vector.broadcast %cst_14 : f32 to vector<8x128xf32>
    %50 = arith.select %48, %44, %49 : vector<8x128xi1>, vector<8x128xf32>
    %51 = tpu.iota {dimensions = array<i32: 0>} : vector<8x128xi32>
    %cst_15 = arith.constant dense<0x7F800000> : vector<128xf32>
    %52 = vector.multi_reduction <minimumf>, %50, %cst_15 [0] : vector<8x128xf32> to vector<128xf32>
    %53 = vector.shape_cast %52 : vector<128xf32> to vector<1x128xf32>
    %54 = vector.broadcast %53 : vector<1x128xf32> to vector<8x128xf32>
    %55 = arith.cmpf oeq, %50, %54 : vector<8x128xf32>
    %c8_i32 = arith.constant 8 : i32
    %56 = vector.broadcast %c8_i32 : i32 to vector<8x128xi32>
    %57 = arith.select %55, %51, %56 : vector<8x128xi1>, vector<8x128xi32>
    %cst_16 = arith.constant dense<2147483647> : vector<128xi32>
    %58 = vector.multi_reduction <minsi>, %57, %cst_16 [0] : vector<8x128xi32> to vector<128xi32>
    %59 = vector.shape_cast %58 : vector<128xi32> to vector<1x128xi32>
    %60 = vector.broadcast %59 : vector<1x128xi32> to vector<8x128xi32>
    %61 = arith.cmpi eq, %51, %60 : vector<8x128xi32>
    %62 = arith.extui %61 : vector<8x128xi1> to vector<8x128xi32>
    %63 = arith.sitofp %62 : vector<8x128xi32> to vector<8x128xf32>
    %cst_17 = arith.constant dense<0.000000e+00> : vector<16x128xf32>
    %64 = tpu.matmul %6, %63, %cst_17 {dimension_numbers = #tpu.dot_dimension_numbers<[1], [0], [0], [1], [0, 0, 1, 1], [], []>, precision = #tpu.contract_precision<fp32>} : vector<16x8xf32>, vector<8x128xf32>, vector<16x128xf32> -> vector<16x128xf32>
    %65 = vector.extract_strided_slice %64 {offsets = [0, 0], sizes = [1, 128], strides = [1, 1]} : vector<16x128xf32> to vector<1x128xf32>
    %66 = vector.extract_strided_slice %64 {offsets = [1, 0], sizes = [1, 128], strides = [1, 1]} : vector<16x128xf32> to vector<1x128xf32>
    %67 = vector.extract_strided_slice %64 {offsets = [2, 0], sizes = [1, 128], strides = [1, 1]} : vector<16x128xf32> to vector<1x128xf32>
    %68 = vector.extract_strided_slice %64 {offsets = [3, 0], sizes = [1, 128], strides = [1, 1]} : vector<16x128xf32> to vector<1x128xf32>
    %69 = vector.extract_strided_slice %64 {offsets = [4, 0], sizes = [1, 128], strides = [1, 1]} : vector<16x128xf32> to vector<1x128xf32>
    %70 = vector.extract_strided_slice %64 {offsets = [8, 0], sizes = [8, 128], strides = [1, 1]} : vector<16x128xf32> to vector<8x128xf32>
    %cst_18 = arith.constant 5.000000e-01 : f32
    %71 = vector.broadcast %cst_18 : f32 to vector<1x128xf32>
    %72 = arith.cmpf ogt, %69, %71 : vector<1x128xf32>
    %73 = arith.subf %22, %65 : vector<1x128xf32>
    %74 = math.absf %73 : vector<1x128xf32>
    %75 = arith.subf %23, %66 : vector<1x128xf32>
    %76 = math.absf %75 : vector<1x128xf32>
    %77 = arith.addf %74, %76 : vector<1x128xf32>
    %78 = arith.subf %24, %67 : vector<1x128xf32>
    %79 = math.absf %78 : vector<1x128xf32>
    %80 = arith.addf %77, %79 : vector<1x128xf32>
    %81 = arith.subf %25, %68 : vector<1x128xf32>
    %82 = math.absf %81 : vector<1x128xf32>
    %83 = arith.addf %80, %82 : vector<1x128xf32>
    %cst_19 = arith.constant 0.000000e+00 : f32
    %84 = vector.broadcast %cst_19 : f32 to vector<1x128xf32>
    %85 = arith.select %72, %83, %84 : vector<1x128xi1>, vector<1x128xf32>
    %cst_20 = arith.constant 1.000000e+00 : f32
    %86 = vector.broadcast %cst_20 : f32 to vector<1x128xf32>
    %87 = arith.mulf %85, %86 : vector<1x128xf32>
    %88 = arith.subf %67, %65 : vector<1x128xf32>
    %89 = arith.subf %68, %66 : vector<1x128xf32>
    %90 = arith.mulf %88, %89 : vector<1x128xf32>
    %91 = arith.subf %24, %22 : vector<1x128xf32>
    %92 = arith.subf %25, %23 : vector<1x128xf32>
    %93 = arith.mulf %91, %92 : vector<1x128xf32>
    %94 = arith.minimumf %67, %24 : vector<1x128xf32>
    %95 = arith.maximumf %65, %22 : vector<1x128xf32>
    %96 = arith.subf %94, %95 : vector<1x128xf32>
    %cst_21 = arith.constant 0.000000e+00 : f32
    %97 = vector.broadcast %cst_21 : f32 to vector<1x128xf32>
    %98 = arith.maximumf %96, %97 : vector<1x128xf32>
    %99 = arith.minimumf %68, %25 : vector<1x128xf32>
    %100 = arith.maximumf %66, %23 : vector<1x128xf32>
    %101 = arith.subf %99, %100 : vector<1x128xf32>
    %cst_22 = arith.constant 0.000000e+00 : f32
    %102 = vector.broadcast %cst_22 : f32 to vector<1x128xf32>
    %103 = arith.maximumf %101, %102 : vector<1x128xf32>
    %104 = arith.mulf %98, %103 : vector<1x128xf32>
    %105 = arith.addf %90, %93 : vector<1x128xf32>
    %106 = arith.subf %105, %104 : vector<1x128xf32>
    %107 = arith.divf %104, %106 : vector<1x128xf32>
    %108 = arith.maximumf %67, %24 : vector<1x128xf32>
    %109 = arith.minimumf %65, %22 : vector<1x128xf32>
    %110 = arith.subf %108, %109 : vector<1x128xf32>
    %cst_23 = arith.constant 0.000000e+00 : f32
    %111 = vector.broadcast %cst_23 : f32 to vector<1x128xf32>
    %112 = arith.maximumf %110, %111 : vector<1x128xf32>
    %113 = arith.maximumf %68, %25 : vector<1x128xf32>
    %114 = arith.minimumf %66, %23 : vector<1x128xf32>
    %115 = arith.subf %113, %114 : vector<1x128xf32>
    %cst_24 = arith.constant 0.000000e+00 : f32
    %116 = vector.broadcast %cst_24 : f32 to vector<1x128xf32>
    %117 = arith.maximumf %115, %116 : vector<1x128xf32>
    %118 = arith.mulf %112, %117 : vector<1x128xf32>
    %119 = arith.subf %118, %106 : vector<1x128xf32>
    %120 = arith.divf %119, %118 : vector<1x128xf32>
    %121 = arith.subf %107, %120 : vector<1x128xf32>
    %cst_25 = arith.constant 1.000000e+08 : f32
    %122 = vector.broadcast %cst_25 : f32 to vector<1x128xf32>
    %123 = arith.select %72, %121, %122 : vector<1x128xi1>, vector<1x128xf32>
    %cst_26 = arith.constant 2.000000e+00 : f32
    %124 = vector.broadcast %cst_26 : f32 to vector<1x128xf32>
    %125 = arith.mulf %123, %124 : vector<1x128xf32>
    %126 = math.absf %12 : vector<8x128xf32>
    %cst_27 = arith.constant 0.000000e+00 : f32
    %127 = vector.broadcast %cst_27 : f32 to vector<8x128xf32>
    %128 = arith.subf %127, %126 : vector<8x128xf32>
    %129 = math.exp %128 : vector<8x128xf32>
    %cst_28 = arith.constant 1.000000e+00 : f32
    %130 = vector.broadcast %cst_28 : f32 to vector<8x128xf32>
    %131 = arith.addf %130, %129 : vector<8x128xf32>
    %132 = math.log %131 : vector<8x128xf32>
    %cst_29 = arith.constant 0.000000e+00 : f32
    %133 = vector.broadcast %cst_29 : f32 to vector<8x128xf32>
    %134 = arith.maximumf %12, %133 : vector<8x128xf32>
    %135 = arith.addf %134, %132 : vector<8x128xf32>
    %136 = arith.mulf %70, %12 : vector<8x128xf32>
    %137 = arith.subf %135, %136 : vector<8x128xf32>
    %cst_30 = arith.constant 0.000000e+00 : f32
    %138 = vector.broadcast %cst_30 : f32 to vector<8x128xf32>
    %139 = arith.cmpf oge, %12, %138 : vector<8x128xf32>
    %cst_31 = arith.constant 1.000000e+00 : f32
    %140 = vector.broadcast %cst_31 : f32 to vector<8x128xf32>
    %141 = arith.select %139, %140, %129 : vector<8x128xi1>, vector<8x128xf32>
    %cst_32 = arith.constant 1.000000e+00 : f32
    %142 = vector.broadcast %cst_32 : f32 to vector<8x128xf32>
    %143 = arith.addf %142, %129 : vector<8x128xf32>
    %144 = arith.divf %141, %143 : vector<8x128xf32>
    %cst_33 = arith.constant 2.000000e+00 : f32
    %145 = vector.broadcast %cst_33 : f32 to vector<8x128xf32>
    %146 = arith.mulf %145, %144 : vector<8x128xf32>
    %cst_34 = arith.constant 1.000000e+00 : f32
    %147 = vector.broadcast %cst_34 : f32 to vector<8x128xf32>
    %148 = arith.subf %147, %146 : vector<8x128xf32>
    %149 = arith.mulf %70, %148 : vector<8x128xf32>
    %150 = arith.addf %144, %149 : vector<8x128xf32>
    %151 = arith.mulf %150, %150 : vector<8x128xf32>
    %cst_35 = arith.constant -5.000000e-01 : f32
    %152 = vector.broadcast %cst_35 : f32 to vector<8x128xf32>
    %153 = arith.mulf %70, %152 : vector<8x128xf32>
    %cst_36 = arith.constant 7.500000e-01 : f32
    %154 = vector.broadcast %cst_36 : f32 to vector<8x128xf32>
    %155 = arith.addf %154, %153 : vector<8x128xf32>
    %156 = arith.mulf %155, %151 : vector<8x128xf32>
    %157 = arith.mulf %156, %137 : vector<8x128xf32>
    %cst_37 = arith.constant dense<0.000000e+00> : vector<128xf32>
    %158 = vector.multi_reduction <add>, %157, %cst_37 [0] : vector<8x128xf32> to vector<128xf32>
    %159 = vector.shape_cast %158 : vector<128xf32> to vector<1x128xf32>
    %cst_38 = arith.constant 8.000000e+00 : f32
    %160 = vector.broadcast %cst_38 : f32 to vector<1x128xf32>
    %161 = arith.divf %159, %160 : vector<1x128xf32>
    %cst_39 = arith.constant 2.000000e+00 : f32
    %162 = arith.mulf %2, %cst_39 : f32
    %163 = vector.broadcast %162 : f32 to vector<1x128xf32>
    %164 = arith.mulf %161, %163 : vector<1x128xf32>
    %165 = tpu.concatenate %164, %87, %125 in 0 : vector<1x128xf32>, vector<1x128xf32>, vector<1x128xf32> -> vector<3x128xf32>
    %c0_40 = arith.constant 0 : index
    %c0_41 = arith.constant 0 : index
    %c0_42 = arith.constant 0 : index
    %166 = vector.load %arg8[%c0_40, %c0_41, %c0_42] : memref<1x3x128xf32, #tpu.memory_space<vmem>>, vector<1x3x128xf32>
    %167 = vector.shape_cast %166 : vector<1x3x128xf32> to vector<3x128xf32>
    %168 = vector.shape_cast %165 : vector<3x128xf32> to vector<1x3x128xf32>
    tpu.vector_store %arg8[%c0_40, %c0_41, %c0_42], %168 {strides = array<i32>} : memref<1x3x128xf32, #tpu.memory_space<vmem>>, vector<1x3x128xf32>,
    return
  }
  func.func @transform_0(%arg0: i32, %arg1: i32, %arg2: memref<2xi32, #tpu.memory_space<smem>>) -> (i32, i32, i32) {
    %c0_i32 = arith.constant 0 : i32
    %c0_i32_0 = arith.constant 0 : i32
    %c0_i32_1 = arith.constant 0 : i32
    return %arg0, %c0_i32, %c0_i32_0 : i32, i32, i32
  }
  func.func @transform_1(%arg0: i32, %arg1: i32, %arg2: memref<2xi32, #tpu.memory_space<smem>>) -> (i32, i32, i32) {
    %c0_i32 = arith.constant 0 : i32
    %c0_i32_0 = arith.constant 0 : i32
    %c0_i32_1 = arith.constant 0 : i32
    return %arg0, %c0_i32, %c0_i32_0 : i32, i32, i32
  }
  func.func @transform_2(%arg0: i32, %arg1: i32, %arg2: memref<2xi32, #tpu.memory_space<smem>>) -> (i32, i32, i32) {
    %c0_i32 = arith.constant 0 : i32
    %c0_i32_0 = arith.constant 0 : i32
    return %arg0, %c0_i32, %arg1 : i32, i32, i32
  }
  func.func @transform_3(%arg0: i32, %arg1: i32, %arg2: memref<2xi32, #tpu.memory_space<smem>>) -> (i32, i32, i32) {
    %c0_i32 = arith.constant 0 : i32
    %c0_i32_0 = arith.constant 0 : i32
    return %arg0, %c0_i32, %arg1 : i32, i32, i32
  }
  func.func @transform_4(%arg0: i32, %arg1: i32, %arg2: memref<2xi32, #tpu.memory_space<smem>>) -> (i32, i32, i32) {
    %c0_i32 = arith.constant 0 : i32
    %c0_i32_0 = arith.constant 0 : i32
    return %arg0, %c0_i32, %arg1 : i32, i32, i32
  }
  func.func @transform_5(%arg0: i32, %arg1: i32, %arg2: memref<2xi32, #tpu.memory_space<smem>>) -> (i32, i32, i32) {
    %c0_i32 = arith.constant 0 : i32
    %c0_i32_0 = arith.constant 0 : i32
    return %arg0, %c0_i32, %arg1 : i32, i32, i32
  }
}

</mosaic_0001>

<llo_original>
// kernel: detection_losses_pallas.1
$region0: #{detection_losses_pallas.1}
  #allocation0 [shape = 'u32[]', space=smem, size = 0x4, offset = 0x4, fixed_abs, tag = 'smem constant byte address 0x4 - core index']
  #allocation1 [shape = 'u32[144,128]{1,0:T(1,128)}', space=vmem, size = 0x12000, scoped, tag = 'internal scratch']
  #allocation2 [shape = 's32[1]{0}', space=sflag, size = 0x4, scoped, tag = 'scoped memory for detection_losses_pallas.1']
  #allocation3 [shape = 'u8[512]{0}', space=smem, size = 0x200, scoped, tag = 'prefetched SMEM operand 0']
  %s0 = inlined_call_operand.vmem [shape: s32[2], index: 0, kind: input, shape index: {}]
  %s1 = inlined_call_operand.vmem [shape: f32[2,8,8], index: 1, kind: input, shape index: {}]
  %s2 = inlined_call_operand.vmem [shape: f32[2,16,8], index: 2, kind: input, shape index: {}]
  %s3 = inlined_call_operand.vmem [shape: f32[2,4,200], index: 3, kind: input, shape index: {}]
  %s4 = inlined_call_operand.vmem [shape: f32[2,4,200], index: 4, kind: input, shape index: {}]
  %s5 = inlined_call_operand.vmem [shape: f32[2,8,200], index: 5, kind: input, shape index: {}]
  %s6 = inlined_call_operand.vmem [shape: f32[2,3,200], index: 6, kind: output, shape index: {}]
  %s7 = sld [smem:[#allocation0]]
  $region53: #{detection_losses_pallas.1} parent=0
    _
  %s9 = ssub.s32 1, %s7
  %s10 = scalar_select 0, %s9, %s7
  %s11 = sshll.u32 %s0, 4
  %s12 = int_to_ptr.vmem [resolvable:$true] %s11
  %14 = dma.vmem_to_smem %s12, 16, [#allocation3], [#allocation2]
  %15 = dma.done [#allocation2], 16
  %16 = sfence
  loop: start=0, step=1, limit=6
  $region2: #{detection_losses_pallas.1} parent=0 // loop_pre_header
    _
  $region3: #{detection_losses_pallas.1} parent=0 // loop_header
    %s18 = sphi 0, %s22
    %p19 = scmp.ge.s32.totalorder %s18, 6
    %s25 = sphi 0, %s37
    %s26 = sphi 0, %s33
    %s27 = sphi 0, %s25
    %s28 = sphi 0, %s26
    %s29 = sphi 0, %s27
    %s30 = sphi 0, %s28
    %s40 = sphi 0, %s42
    %s43 = sphi 0, %s40
    %s44 = sphi 0, %s43
    %s60 = sphi 0, %s44
    %s66 = sphi 0, %s68
    %s69 = sphi 0, %s66
    %s70 = sphi 0, %s69
    %s86 = sphi 0, %s70
    %s94 = sphi 0, %s96
    %s97 = sphi 0, %s94
    %s98 = sphi 0, %s97
    %s114 = sphi 0, %s98
    %s122 = sphi 0, %s124
    %s125 = sphi 0, %s122
    %s126 = sphi 0, %s125
    %s142 = sphi 0, %s126
    %s150 = sphi 0, %s152
    %s153 = sphi 0, %s150
    %s154 = sphi 0, %s153
    %s170 = sphi 0, %s154
    %s178 = sphi 0, %s180
    %s181 = sphi 0, %s178
    %s182 = sphi 0, %s181
    %s198 = sphi 0, %s182
  $region4: #{detection_losses_pallas.1} parent=0 // loop_header_branch
    %21 = sbr.rel (%p19) target = $region8
  $region5: #{detection_losses_pallas.1} parent=0 // loop_body
    %s23 = ssub.s32 %s18, 1
    %s24 = ssub.s32 %s18, 2
    %s31 = sadd.s32 1, %s26
    %p32 = scmp.ge.s32.totalorder %s31, 2
    %s33 = scalar_select %p32, 0, %s31
    %s34 = sadd.s32 1, %s25
    %s35 = scalar_select %p32, %s34, %s25
    %p36 = scmp.ge.s32.totalorder %s35, 2
    %s37 = scalar_select %p36, 0, %s35
    %s38 = ssub.s32 %s25, %s37
    %p39 = scmp.eq.s32.totalorder %s38, 0
    %s41 = sadd.s32 %s40, 1
    %s42 = scalar_select %p39, %s40, %s41
    %p45 = pneg %p39
    %p46 = scmp.eq.s32.totalorder %s18, 3
    %p47 = por %p45, %p46
    %p48 = scmp.ne.s32.totalorder %s40, %s43
    %p49 = scmp.eq.s32.totalorder %s18, 0
    %p50 = por %p48, %p49
    %p51 = scmp.ne.s32.totalorder %s40, %s43
    %p52 = scmp.eq.s32.totalorder %s23, 3
    %p53 = por %p51, %p52
    %p54 = scmp.ne.s32.totalorder %s43, %s44
    %p55 = scmp.eq.s32.totalorder %s23, 0
    %p56 = por %p54, %p55
    %p57 = scmp.ne.s32.totalorder %s43, %s44
    %p58 = scmp.eq.s32.totalorder %s24, 3
    %p59 = por %p57, %p58
    %p61 = scmp.ne.s32.totalorder %s44, %s60
    %p62 = scmp.eq.s32.totalorder %s24, 0
    %p63 = por %p61, %p62
    %s64 = ssub.s32 %s25, %s37
    %p65 = scmp.eq.s32.totalorder %s64, 0
    %s67 = sadd.s32 %s66, 1
    %s68 = scalar_select %p65, %s66, %s67
    %p71 = pneg %p65
    %p72 = scmp.eq.s32.totalorder %s18, 3
    %p73 = por %p71, %p72
    %p74 = scmp.ne.s32.totalorder %s66, %s69
    %p75 = scmp.eq.s32.totalorder %s18, 0
    %p76 = por %p74, %p75
    %p77 = scmp.ne.s32.totalorder %s66, %s69
    %p78 = scmp.eq.s32.totalorder %s23, 3
    %p79 = por %p77, %p78
    %p80 = scmp.ne.s32.totalorder %s69, %s70
    %p81 = scmp.eq.s32.totalorder %s23, 0
    %p82 = por %p80, %p81
    %p83 = scmp.ne.s32.totalorder %s69, %s70
    %p84 = scmp.eq.s32.totalorder %s24, 3
    %p85 = por %p83, %p84
    %p87 = scmp.ne.s32.totalorder %s70, %s86
    %p88 = scmp.eq.s32.totalorder %s24, 0
    %p89 = por %p87, %p88
    %s90 = ssub.s32 %s25, %s37
    %s91 = ssub.s32 %s26, %s33
    %s92 = sor.u32 %s90, %s91
    %p93 = scmp.eq.s32.totalorder %s92, 0
    %s95 = sadd.s32 %s94, 1
    %s96 = scalar_select %p93, %s94, %s95
    %p99 = pneg %p93
    %p100 = scmp.eq.s32.totalorder %s18, 3
    %p101 = por %p99, %p100
    %p102 = scmp.ne.s32.totalorder %s94, %s97
    %p103 = scmp.eq.s32.totalorder %s18, 0
    %p104 = por %p102, %p103
    %p105 = scmp.ne.s32.totalorder %s94, %s97
    %p106 = scmp.eq.s32.totalorder %s23, 3
    %p107 = por %p105, %p106
    %p108 = scmp.ne.s32.totalorder %s97, %s98
    %p109 = scmp.eq.s32.totalorder %s23, 0
    %p110 = por %p108, %p109
    %p111 = scmp.ne.s32.totalorder %s97, %s98
    %p112 = scmp.eq.s32.totalorder %s24, 3
    %p113 = por %p111, %p112
    %p115 = scmp.ne.s32.totalorder %s98, %s114
    %p116 = scmp.eq.s32.totalorder %s24, 0
    %p117 = por %p115, %p116
    %s118 = ssub.s32 %s25, %s37
    %s119 = ssub.s32 %s26, %s33
    %s120 = sor.u32 %s118, %s119
    %p121 = scmp.eq.s32.totalorder %s120, 0
    %s123 = sadd.s32 %s122, 1
    %s124 = scalar_select %p121, %s122, %s123
    %p127 = pneg %p121
    %p128 = scmp.eq.s32.totalorder %s18, 3
    %p129 = por %p127, %p128
    %p130 = scmp.ne.s32.totalorder %s122, %s125
    %p131 = scmp.eq.s32.totalorder %s18, 0
    %p132 = por %p130, %p131
    %p133 = scmp.ne.s32.totalorder %s122, %s125
    %p134 = scmp.eq.s32.totalorder %s23, 3
    %p135 = por %p133, %p134
    %p136 = scmp.ne.s32.totalorder %s125, %s126
    %p137 = scmp.eq.s32.totalorder %s23, 0
    %p138 = por %p136, %p137
    %p139 = scmp.ne.s32.totalorder %s125, %s126
    %p140 = scmp.eq.s32.totalorder %s24, 3
    %p141 = por %p139, %p140
    %p143 = scmp.ne.s32.totalorder %s126, %s142
    %p144 = scmp.eq.s32.totalorder %s24, 0
    %p145 = por %p143, %p144
    %s146 = ssub.s32 %s25, %s37
    %s147 = ssub.s32 %s26, %s33
    %s148 = sor.u32 %s146, %s147
    %p149 = scmp.eq.s32.totalorder %s148, 0
    %s151 = sadd.s32 %s150, 1
    %s152 = scalar_select %p149, %s150, %s151
    %p155 = pneg %p149
    %p156 = scmp.eq.s32.totalorder %s18, 3
    %p157 = por %p155, %p156
    %p158 = scmp.ne.s32.totalorder %s150, %s153
    %p159 = scmp.eq.s32.totalorder %s18, 0
    %p160 = por %p158, %p159
    %p161 = scmp.ne.s32.totalorder %s150, %s153
    %p162 = scmp.eq.s32.totalorder %s23, 3
    %p163 = por %p161, %p162
    %p164 = scmp.ne.s32.totalorder %s153, %s154
    %p165 = scmp.eq.s32.totalorder %s23, 0
    %p166 = por %p164, %p165
    %p167 = scmp.ne.s32.totalorder %s153, %s154
    %p168 = scmp.eq.s32.totalorder %s24, 3
    %p169 = por %p167, %p168
    %p171 = scmp.ne.s32.totalorder %s154, %s170
    %p172 = scmp.eq.s32.totalorder %s24, 0
    %p173 = por %p171, %p172
    %s174 = ssub.s32 %s25, %s37
    %s175 = ssub.s32 %s26, %s33
    %s176 = sor.u32 %s174, %s175
    %p177 = scmp.eq.s32.totalorder %s176, 0
    %s179 = sadd.s32 %s178, 1
    %s180 = scalar_select %p177, %s178, %s179
    %p183 = pneg %p177
    %p184 = scmp.eq.s32.totalorder %s18, 3
    %p185 = por %p183, %p184
    %p186 = scmp.ne.s32.totalorder %s178, %s181
    %p187 = scmp.eq.s32.totalorder %s18, 0
    %p188 = por %p186, %p187
    %p189 = scmp.ne.s32.totalorder %s178, %s181
    %p190 = scmp.eq.s32.totalorder %s23, 3
    %p191 = por %p189, %p190
    %p192 = scmp.ne.s32.totalorder %s181, %s182
    %p193 = scmp.eq.s32.totalorder %s23, 0
    %p194 = por %p192, %p193
    %p195 = scmp.ne.s32.totalorder %s181, %s182
    %p196 = scmp.eq.s32.totalorder %s24, 3
    %p197 = por %p195, %p196
    %p199 = scmp.ne.s32.totalorder %s182, %s198
    %p200 = scmp.eq.s32.totalorder %s24, 0
    %p201 = por %p199, %p200
    %p202 = scmp.le.s32.totalorder 1, %s18
    %p203 = scmp.lt.s32.totalorder %s18, 5
    %p204 = pnand %p202, %p203
    %p205 = pneg %p204
    // Predicated region
    $region9: #{detection_losses_pallas.1} parent=5 // pred_check
      _
    $region10: #{detection_losses_pallas.1} parent=5 // pred_check_branch
      %207 = sbr.rel (%p204) target = $region12
    $region11: #{detection_losses_pallas.1} parent=5 // pred_region
      %s208 = ssub.s32 %s18, 1
    $region12: #{detection_losses_pallas.1} parent=5 // pred_fallthru
      _
    %p209 = scmp.lt.s32.totalorder %s18, 4
    // Predicated region
    $region13: #{detection_losses_pallas.1} parent=5 // pred_check
      %p210 = pneg %p209
    $region14: #{detection_losses_pallas.1} parent=5 // pred_check_branch
      %212 = sbr.rel (%p210) target = $region16
    $region15: #{detection_losses_pallas.1} parent=5 // pred_region
      // Predicated region
      $region17: #{detection_losses_pallas.1} parent=15 // pred_check
        %p213 = pneg %p50
      $region18: #{detection_losses_pallas.1} parent=15 // pred_check_branch
        %215 = sbr.rel (%p213) target = $region20
      $region19: #{detection_losses_pallas.1} parent=15 // pred_region
        %p216 = scmp.lt.s32.totalorder %s25, 1
        %s217 = scalar_select %p216, %s25, 1
        %s218 = smul.addr %s217, 8
        %s219 = scalar_lea.vmem %s1, %s218
      $region20: #{detection_losses_pallas.1} parent=15 // pred_fallthru
        _
      // Predicated region
      $region21: #{detection_losses_pallas.1} parent=15 // pred_check
        %p220 = pneg %p76
      $region22: #{detection_losses_pallas.1} parent=15 // pred_check_branch
        %222 = sbr.rel (%p220) target = $region24
      $region23: #{detection_losses_pallas.1} parent=15 // pred_region
        %p223 = scmp.lt.s32.totalorder %s25, 1
        %s224 = scalar_select %p223, %s25, 1
        %s225 = smul.addr %s224, 2
        %s226 = smul.addr %s225, 8
        %s227 = scalar_lea.vmem %s2, %s226
      $region24: #{detection_losses_pallas.1} parent=15 // pred_fallthru
        _
      // Predicated region
      $region25: #{detection_losses_pallas.1} parent=15 // pred_check
        %p228 = pneg %p104
      $region26: #{detection_losses_pallas.1} parent=15 // pred_check_branch
        %230 = sbr.rel (%p228) target = $region28
      $region27: #{detection_losses_pallas.1} parent=15 // pred_region
        %p231 = scmp.lt.s32.totalorder %s25, 1
        %s232 = scalar_select %p231, %s25, 1
        %p233 = scmp.lt.s32.totalorder %s26, 1
        %s234 = scalar_select %p233, %s26, 1
        %s235 = smul.addr %s232, 2
        %s236 = sadd.s32 %s234, %s235
        %s237 = smul.addr %s236, 4
        %s238 = scalar_lea.vmem %s3, %s237
      $region28: #{detection_losses_pallas.1} parent=15 // pred_fallthru
        _
      // Predicated region
      $region29: #{detection_losses_pallas.1} parent=15 // pred_check
        %p239 = pneg %p132
      $region30: #{detection_losses_pallas.1} parent=15 // pred_check_branch
        %241 = sbr.rel (%p239) target = $region32
      $region31: #{detection_losses_pallas.1} parent=15 // pred_region
        %p242 = scmp.lt.s32.totalorder %s25, 1
        %s243 = scalar_select %p242, %s25, 1
        %p244 = scmp.lt.s32.totalorder %s26, 1
        %s245 = scalar_select %p244, %s26, 1
        %s246 = smul.addr %s243, 2
        %s247 = sadd.s32 %s245, %s246
        %s248 = smul.addr %s247, 4
        %s249 = scalar_lea.vmem %s4, %s248
      $region32: #{detection_losses_pallas.1} parent=15 // pred_fallthru
        _
      // Predicated region
      $region33: #{detection_losses_pallas.1} parent=15 // pred_check
        %p250 = pneg %p160
      $region34: #{detection_losses_pallas.1} parent=15 // pred_check_branch
        %252 = sbr.rel (%p250) target = $region36
      $region35: #{detection_losses_pallas.1} parent=15 // pred_region
        %p253 = scmp.lt.s32.totalorder %s25, 1
        %s254 = scalar_select %p253, %s25, 1
        %p255 = scmp.lt.s32.totalorder %s26, 1
        %s256 = scalar_select %p255, %s26, 1
        %s257 = smul.addr %s254, 2
        %s258 = sadd.s32 %s256, %s257
        %s259 = smul.addr %s258, 8
        %s260 = scalar_lea.vmem %s5, %s259
      $region36: #{detection_losses_pallas.1} parent=15 // pred_fallthru
        _
    $region16: #{detection_losses_pallas.1} parent=5 // pred_fallthru
      _
    %p261 = scmp.le.s32.totalorder 1, %s18
    %p262 = scmp.lt.s32.totalorder %s18, 5
    %p263 = pnand %p261, %p262
    %p264 = pneg %p263
    // Predicated region
    $region37: #{detection_losses_pallas.1} parent=5 // pred_check
      _
    $region38: #{detection_losses_pallas.1} parent=5 // pred_check_branch
      %266 = sbr.rel (%p263) target = $region40
    $region39: #{detection_losses_pallas.1} parent=5 // pred_region
      %s267 = ssub.s32 %s18, 1
      %p268 = scmp.lt.s32.totalorder %s27, 1
      %s269 = scalar_select %p268, %s27, 1
      %s270 = smul.addr %s269, 8
      %s271 = scalar_lea.vmem %s1, %s270
      %p272 = pneg %p56
      %p273 = pneg %p53
      %p274 = scmp.lt.s32.totalorder %s27, 1
      %s275 = scalar_select %p274, %s27, 1
      %s276 = smul.addr %s275, 2
      %s277 = smul.addr %s276, 8
      %s278 = scalar_lea.vmem %s2, %s277
      %p279 = pneg %p82
      %p280 = pneg %p79
      %p281 = scmp.lt.s32.totalorder %s27, 1
      %s282 = scalar_select %p281, %s27, 1
      %p283 = scmp.lt.s32.totalorder %s28, 1
      %s284 = scalar_select %p283, %s28, 1
      %s285 = smul.addr %s282, 2
      %s286 = sadd.s32 %s284, %s285
      %s287 = smul.addr %s286, 4
      %s288 = scalar_lea.vmem %s3, %s287
      %p289 = pneg %p110
      %p290 = pneg %p107
      %p291 = scmp.lt.s32.totalorder %s27, 1
      %s292 = scalar_select %p291, %s27, 1
      %p293 = scmp.lt.s32.totalorder %s28, 1
      %s294 = scalar_select %p293, %s28, 1
      %s295 = smul.addr %s292, 2
      %s296 = sadd.s32 %s294, %s295
      %s297 = smul.addr %s296, 4
      %s298 = scalar_lea.vmem %s4, %s297
      %p299 = pneg %p138
      %p300 = pneg %p135
      %p301 = scmp.lt.s32.totalorder %s27, 1
      %s302 = scalar_select %p301, %s27, 1
      %p303 = scmp.lt.s32.totalorder %s28, 1
      %s304 = scalar_select %p303, %s28, 1
      %s305 = smul.addr %s302, 2
      %s306 = sadd.s32 %s304, %s305
      %s307 = smul.addr %s306, 8
      %s308 = scalar_lea.vmem %s5, %s307
      %p309 = pneg %p166
      %p310 = pneg %p163
      %p311 = pneg %p194
      %p312 = pneg %p191
      %p313 = scmp.lt.s32.totalorder %s27, 1
      %s314 = scalar_select %p313, %s27, 1
      %p315 = scmp.lt.s32.totalorder %s28, 1
      %s316 = scalar_select %p315, %s28, 1
      %s317 = smul.addr %s314, 2
      %s318 = sadd.s32 %s316, %s317
      %s319 = smul.addr %s318, 4
      %s320 = scalar_lea.vmem %s6, %s319
      %p321 = scmp.lt.s32.totalorder %s27, 1
      %s322 = scalar_select %p321, %s27, 1
      %s323 = smul.addr %s322, 8
      %s324 = scalar_lea.vmem %s1, %s323
      %p325 = scmp.lt.s32.totalorder %s27, 1
      %s326 = scalar_select %p325, %s27, 1
      %s327 = smul.addr %s326, 2
      %s328 = smul.addr %s327, 8
      %s329 = scalar_lea.vmem %s2, %s328
      %p330 = scmp.lt.s32.totalorder %s27, 1
      %s331 = scalar_select %p330, %s27, 1
      %p332 = scmp.lt.s32.totalorder %s28, 1
      %s333 = scalar_select %p332, %s28, 1
      %s334 = smul.addr %s331, 2
      %s335 = sadd.s32 %s333, %s334
      %s336 = smul.addr %s335, 4
      %s337 = scalar_lea.vmem %s3, %s336
      %p338 = scmp.lt.s32.totalorder %s27, 1
      %s339 = scalar_select %p338, %s27, 1
      %p340 = scmp.lt.s32.totalorder %s28, 1
      %s341 = scalar_select %p340, %s28, 1
      %s342 = smul.addr %s339, 2
      %s343 = sadd.s32 %s341, %s342
      %s344 = smul.addr %s343, 4
      %s345 = scalar_lea.vmem %s4, %s344
      %p346 = scmp.lt.s32.totalorder %s27, 1
      %s347 = scalar_select %p346, %s27, 1
      %p348 = scmp.lt.s32.totalorder %s28, 1
      %s349 = scalar_select %p348, %s28, 1
      %s350 = smul.addr %s347, 2
      %s351 = sadd.s32 %s349, %s350
      %s352 = smul.addr %s351, 8
      %s353 = scalar_lea.vmem %s5, %s352
      %p354 = scmp.lt.s32.totalorder %s27, 1
      %s355 = scalar_select %p354, %s27, 1
      %p356 = scmp.lt.s32.totalorder %s28, 1
      %s357 = scalar_select %p356, %s28, 1
      %s358 = smul.addr %s355, 2
      %s359 = sadd.s32 %s357, %s358
      %s360 = smul.addr %s359, 4
      %s361 = scalar_lea.vmem %s6, %s360
      %s362 = sld [smem:[#allocation3 + %s27]]
      %s363 = scvt.s32.f32 %s362
      %v364 = vld [vmem:[%s324] sm:$0xff]
      %v365 = vld [vmem:[%s329] sm:$0xff]
      %v366 = vld [vmem:[%s329 + $0x8] sm:$0xff]
      %v367 = vld [vmem:[%s337] sm:$0xf]
      %v368 = vld [vmem:[%s345] sm:$0xf]
      %v369 = vld [vmem:[%s353] sm:$0xff]
      %371 = vset.pattern.permute.xlu0 0
      %372 = vperm.xlu0 %371, %v364
      %v373 = vpop.permute.xlu0 %372
      %v375 = vlaneseq
      %v376 = vshrl.u32 %v375, 7
      %v377 = vsub.s32 0, %v376
      %v378 = vrot.slane %v367, %v377
      %v379 = vsub.f32 %v373, %v378
      %v380 = vand.u32 2147483647, %v379
      %381 = vset.pattern.permute.xlu0 1
      %382 = vperm.xlu0 %381, %v364
      %v383 = vpop.permute.xlu0 %382
      %v385 = vlaneseq
      %v386 = vshrl.u32 %v385, 7
      %v387 = vsub.s32 1, %v386
      %v388 = vrot.slane %v367, %v387
      %v389 = vsub.f32 %v383, %v388
      %v390 = vand.u32 2147483647, %v389
      %v391 = vadd.f32 %v380, %v390
      %392 = vset.pattern.permute.xlu0 2
      %393 = vperm.xlu0 %392, %v364
      %v394 = vpop.permute.xlu0 %393
      %v396 = vlaneseq
      %v397 = vshrl.u32 %v396, 7
      %v398 = vsub.s32 2, %v397
      %v399 = vrot.slane %v367, %v398
      %v400 = vsub.f32 %v394, %v399
      %v401 = vand.u32 2147483647, %v400
      %v402 = vadd.f32 %v391, %v401
      %403 = vset.pattern.permute.xlu0 3
      %404 = vperm.xlu0 %403, %v364
      %v405 = vpop.permute.xlu0 %404
      %v407 = vlaneseq
      %v408 = vshrl.u32 %v407, 7
      %v409 = vsub.s32 3, %v408
      %v410 = vrot.slane %v367, %v409
      %v411 = vsub.f32 %v405, %v410
      %v412 = vand.u32 2147483647, %v411
      %v413 = vadd.f32 %v402, %v412
      %vm414 = vcmp.gt.f32.partialorder %v364, 0.5
      %v415 = vsel %vm414, 1, 0
      %416 = vset.pattern.permute.xlu0 4
      %417 = vperm.xlu0 %416, %v415
      %v418 = vpop.permute.xlu0 %417
      %vm419 = vcmp.eq.s32.totalorder %v418, 1
      %v420 = vsel %vm419, %v413, 1e+08
      %v421 = vlaneseq
      %v422 = vshrl.u32 %v421, 7
      %v423 = vrot.slane %v420, 4
      %v424 = vmin.f32 %v420, %v423
      %v425 = vrot.slane %v424, 2
      %v426 = vmin.f32 %v424, %v425
      %v427 = vrot.slane %v426, 1
      %v428 = vmin.f32 %v426, %v427
      %vm429 = vcmp.eq.f32.partialorder %v420, %v428
      %v430 = vsel %vm429, %v422, 8
      %v431 = vrot.slane %v430, 4
      %vm432 = vcmp.lt.s32.totalorder %v430, %v431
      %v433 = vsel %vm432, %v430, %v431
      %v434 = vrot.slane %v433, 2
      %vm435 = vcmp.lt.s32.totalorder %v433, %v434
      %v436 = vsel %vm435, %v433, %v434
      %v437 = vrot.slane %v436, 1
      %vm438 = vcmp.lt.s32.totalorder %v436, %v437
      %v439 = vsel %vm438, %v436, %v437
      %vm440 = vcmp.eq.s32.totalorder %v422, %v439
      %v441 = vsel %vm440, 1, 0
      %v442 = vcvt.s32.f32 %v441
      %vm443 = vcmask 64512
      %v445 = vsel %vm443, %v365, 0
      %v448 = vsel %vm443, %v366, 0
      %450 = vmatprep.subr.mxu0 0.0
      %v451 = vand.u32 %v442, 4294901760
      %452 = vmatpush1.msra.mxu0 %v451
      %453 = vmatprep.subr.mxu0 0.0
      %454 = vmatpush1.msra.mxu0 0.0
      %455 = vmatprep.subr.mxu0 0.0
      %456 = vmatpush1.msra.mxu0 0.0
      %457 = vmatprep.subr.mxu0 0.0
      %458 = vmatpush1.msra.mxu0 0.0
      %459 = vmatprep.subr.mxu0 0.0
      %460 = vmatpush1.msra.mxu0 0.0
      %461 = vmatprep.subr.mxu0 0.0
      %462 = vmatpush1.msra.mxu0 0.0
      %463 = vmatprep.subr.mxu0 0.0
      %464 = vmatpush1.msra.mxu0 0.0
      %465 = vmatprep.subr.mxu0 0.0
      %466 = vmatpush1.msra.mxu0 0.0
      %467 = vmatprep.subr.mxu0 0.0
      %468 = vmatpush1.msra.mxu0 0.0
      %469 = vmatprep.subr.mxu0 0.0
      %470 = vmatpush1.msra.mxu0 0.0
      %471 = vmatprep.subr.mxu0 0.0
      %472 = vmatpush1.msra.mxu0 0.0
      %473 = vmatprep.subr.mxu0 0.0
      %474 = vmatpush1.msra.mxu0 0.0
      %475 = vmatprep.subr.mxu0 0.0
      %476 = vmatpush1.msra.mxu0 0.0
      %477 = vmatprep.subr.mxu0 0.0
      %478 = vmatpush1.msra.mxu0 0.0
      %479 = vmatprep.subr.mxu0 0.0
      %480 = vmatpush1.msra.mxu0 0.0
      %481 = vmatprep.subr.mxu0 0.0
      %482 = vmatpush1.msra.mxu0 0.0
      %483 = vmatprep.subr.mxu0 0.0
      %484 = vmatpush1.msra.mxu0 0.0
      %485 = vmatprep.subr.mxu0 0.0
      %486 = vmatpush1.msra.mxu0 0.0
      %487 = vmatprep.subr.mxu0 0.0
      %488 = vmatpush1.msra.mxu0 0.0
      %489 = vmatprep.subr.mxu0 0.0
      %490 = vmatpush1.msra.mxu0 0.0
      %491 = vmatprep.subr.mxu0 0.0
      %492 = vmatpush1.msra.mxu0 0.0
      %493 = vmatprep.subr.mxu0 0.0
      %494 = vmatpush1.msra.mxu0 0.0
      %495 = vmatprep.subr.mxu0 0.0
      %496 = vmatpush1.msra.mxu0 0.0
      %497 = vmatprep.subr.mxu0 0.0
      %498 = vmatpush1.msra.mxu0 0.0
      %499 = vmatprep.subr.mxu0 0.0
      %500 = vmatpush1.msra.mxu0 0.0
      %501 = vmatprep.subr.mxu0 0.0
      %502 = vmatpush1.msra.mxu0 0.0
      %503 = vmatprep.subr.mxu0 0.0
      %504 = vmatpush1.msra.mxu0 0.0
      %505 = vmatprep.subr.mxu0 0.0
      %506 = vmatpush1.msra.mxu0 0.0
      %507 = vmatprep.subr.mxu0 0.0
      %508 = vmatpush1.msra.mxu0 0.0
      %509 = vmatprep.subr.mxu0 0.0
      %510 = vmatpush1.msra.mxu0 0.0
      %511 = vmatprep.subr.mxu0 0.0
      %512 = vmatpush1.msra.mxu0 0.0
      %513 = vmatprep.subr.mxu0 0.0
      %514 = vmatpush1.msra.mxu0 0.0
      %515 = vmatprep.mubr.f32.mxu0 0.0
      %v516 = vand.u32 %v445, 4294901760
      %v517 = vsub.f32 %v445, %v516
      %v518 = vand.u32 %v517, 4294901760
      %v519 = vsub.f32 %v517, %v518
      %v520 = vand.u32 %v519, 4294901760
      %521 = vmatmul.mubr.f32.gmra.mrb[0].mxu0 %v520
      %v522 = vpop.f32.mrb[0].mxu0
      %v523 = vadd.f32 0.0, %v522
      %v524 = vpop.f32.mrb[0].mxu0
      %525 = vmatprep.mubr.f32.mxu0 0.0
      %v526 = vand.u32 %v448, 4294901760
      %v527 = vsub.f32 %v448, %v526
      %v528 = vand.u32 %v527, 4294901760
      %v529 = vsub.f32 %v527, %v528
      %v530 = vand.u32 %v529, 4294901760
      %531 = vmatmul.mubr.f32.gmra.mrb[0].mxu0 %v530
      %v532 = vpop.f32.mrb[0].mxu0
      %v533 = vadd.f32 0.0, %v532
      %v534 = vpop.f32.mrb[0].mxu0
      %535 = vdwg.mxu0
      %536 = vmatprep.subr.mxu0 0.0
      %v537 = vand.u32 %v442, 4294901760
      %v538 = vsub.f32 %v442, %v537
      %v539 = vand.u32 %v538, 4294901760
      %v540 = vsub.f32 %v538, %v539
      %v541 = vand.u32 %v540, 4294901760
      %542 = vmatpush1.msra.mxu0 %v541
      %543 = vmatprep.subr.mxu0 0.0
      %544 = vmatpush1.msra.mxu0 0.0
      %545 = vmatprep.subr.mxu0 0.0
      %546 = vmatpush1.msra.mxu0 0.0
      %547 = vmatprep.subr.mxu0 0.0
      %548 = vmatpush1.msra.mxu0 0.0
      %549 = vmatprep.subr.mxu0 0.0
      %550 = vmatpush1.msra.mxu0 0.0
      %551 = vmatprep.subr.mxu0 0.0
      %552 = vmatpush1.msra.mxu0 0.0
      %553 = vmatprep.subr.mxu0 0.0
      %554 = vmatpush1.msra.mxu0 0.0
      %555 = vmatprep.subr.mxu0 0.0
      %556 = vmatpush1.msra.mxu0 0.0
      %557 = vmatprep.subr.mxu0 0.0
      %558 = vmatpush1.msra.mxu0 0.0
      %559 = vmatprep.subr.mxu0 0.0
      %560 = vmatpush1.msra.mxu0 0.0
      %561 = vmatprep.subr.mxu0 0.0
      %562 = vmatpush1.msra.mxu0 0.0
      %563 = vmatprep.subr.mxu0 0.0
      %564 = vmatpush1.msra.mxu0 0.0
      %565 = vmatprep.subr.mxu0 0.0
      %566 = vmatpush1.msra.mxu0 0.0
      %567 = vmatprep.subr.mxu0 0.0
      %568 = vmatpush1.msra.mxu0 0.0
      %569 = vmatprep.subr.mxu0 0.0
      %570 = vmatpush1.msra.mxu0 0.0
      %571 = vmatprep.subr.mxu0 0.0
      %572 = vmatpush1.msra.mxu0 0.0
      %573 = vmatprep.subr.mxu0 0.0
      %574 = vmatpush1.msra.mxu0 0.0
      %575 = vmatprep.subr.mxu0 0.0
      %576 = vmatpush1.msra.mxu0 0.0
      %577 = vmatprep.subr.mxu0 0.0
      %578 = vmatpush1.msra.mxu0 0.0
      %579 = vmatprep.subr.mxu0 0.0
      %580 = vmatpush1.msra.mxu0 0.0
      %581 = vmatprep.subr.mxu0 0.0
      %582 = vmatpush1.msra.mxu0 0.0
      %583 = vmatprep.subr.mxu0 0.0
      %584 = vmatpush1.msra.mxu0 0.0
      %585 = vmatprep.subr.mxu0 0.0
      %586 = vmatpush1.msra.mxu0 0.0
      %587 = vmatprep.subr.mxu0 0.0
      %588 = vmatpush1.msra.mxu0 0.0
      %589 = vmatprep.subr.mxu0 0.0
      %590 = vmatpush1.msra.mxu0 0.0
      %591 = vmatprep.subr.mxu0 0.0
      %592 = vmatpush1.msra.mxu0 0.0
      %593 = vmatprep.subr.mxu0 0.0
      %594 = vmatpush1.msra.mxu0 0.0
      %595 = vmatprep.subr.mxu0 0.0
      %596 = vmatpush1.msra.mxu0 0.0
      %597 = vmatprep.subr.mxu0 0.0
      %598 = vmatpush1.msra.mxu0 0.0
      %599 = vmatprep.subr.mxu0 0.0
      %600 = vmatpush1.msra.mxu0 0.0
      %601 = vmatprep.subr.mxu0 0.0
      %602 = vmatpush1.msra.mxu0 0.0
      %603 = vmatprep.subr.mxu0 0.0
      %604 = vmatpush1.msra.mxu0 0.0
      %605 = vmatprep.mubr.f32.mxu0 0.0
      %v606 = vand.u32 %v445, 4294901760
      %607 = vmatmul.mubr.f32.gmra.mrb[0].mxu0 %v606
      %v608 = vpop.f32.mrb[0].mxu0
      %v609 = vadd.f32 %v523, %v608
      %v610 = vpop.f32.mrb[0].mxu0
      %611 = vmatprep.mubr.f32.mxu0 0.0
      %v612 = vand.u32 %v448, 4294901760
      %613 = vmatmul.mubr.f32.gmra.mrb[0].mxu0 %v612
      %v614 = vpop.f32.mrb[0].mxu0
      %v615 = vadd.f32 %v533, %v614
      %v616 = vpop.f32.mrb[0].mxu0
      %617 = vdwg.mxu0
      %618 = vmatprep.subr.mxu0 0.0
      %v619 = vand.u32 %v442, 4294901760
      %v620 = vsub.f32 %v442, %v619
      %621 = vmatpush1.msra.mxu0 %v620
      %622 = vmatprep.subr.mxu0 0.0
      %623 = vmatpush1.msra.mxu0 0.0
      %624 = vmatprep.subr.mxu0 0.0
      %625 = vmatpush1.msra.mxu0 0.0
      %626 = vmatprep.subr.mxu0 0.0
      %627 = vmatpush1.msra.mxu0 0.0
      %628 = vmatprep.subr.mxu0 0.0
      %629 = vmatpush1.msra.mxu0 0.0
      %630 = vmatprep.subr.mxu0 0.0
      %631 = vmatpush1.msra.mxu0 0.0
      %632 = vmatprep.subr.mxu0 0.0
      %633 = vmatpush1.msra.mxu0 0.0
      %634 = vmatprep.subr.mxu0 0.0
      %635 = vmatpush1.msra.mxu0 0.0
      %636 = vmatprep.subr.mxu0 0.0
      %637 = vmatpush1.msra.mxu0 0.0
      %638 = vmatprep.subr.mxu0 0.0
      %639 = vmatpush1.msra.mxu0 0.0
      %640 = vmatprep.subr.mxu0 0.0
      %641 = vmatpush1.msra.mxu0 0.0
      %642 = vmatprep.subr.mxu0 0.0
      %643 = vmatpush1.msra.mxu0 0.0
      %644 = vmatprep.subr.mxu0 0.0
      %645 = vmatpush1.msra.mxu0 0.0
      %646 = vmatprep.subr.mxu0 0.0
      %647 = vmatpush1.msra.mxu0 0.0
      %648 = vmatprep.subr.mxu0 0.0
      %649 = vmatpush1.msra.mxu0 0.0
      %650 = vmatprep.subr.mxu0 0.0
      %651 = vmatpush1.msra.mxu0 0.0
      %652 = vmatprep.subr.mxu0 0.0
      %653 = vmatpush1.msra.mxu0 0.0
      %654 = vmatprep.subr.mxu0 0.0
      %655 = vmatpush1.msra.mxu0 0.0
      %656 = vmatprep.subr.mxu0 0.0
      %657 = vmatpush1.msra.mxu0 0.0
      %658 = vmatprep.subr.mxu0 0.0
      %659 = vmatpush1.msra.mxu0 0.0
      %660 = vmatprep.subr.mxu0 0.0
      %661 = vmatpush1.msra.mxu0 0.0
      %662 = vmatprep.subr.mxu0 0.0
      %663 = vmatpush1.msra.mxu0 0.0
      %664 = vmatprep.subr.mxu0 0.0
      %665 = vmatpush1.msra.mxu0 0.0
      %666 = vmatprep.subr.mxu0 0.0
      %667 = vmatpush1.msra.mxu0 0.0
      %668 = vmatprep.subr.mxu0 0.0
      %669 = vmatpush1.msra.mxu0 0.0
      %670 = vmatprep.subr.mxu0 0.0
      %671 = vmatpush1.msra.mxu0 0.0
      %672 = vmatprep.subr.mxu0 0.0
      %673 = vmatpush1.msra.mxu0 0.0
      %674 = vmatprep.subr.mxu0 0.0
      %675 = vmatpush1.msra.mxu0 0.0
      %676 = vmatprep.subr.mxu0 0.0
      %677 = vmatpush1.msra.mxu0 0.0
      %678 = vmatprep.subr.mxu0 0.0
      %679 = vmatpush1.msra.mxu0 0.0
      %680 = vmatprep.subr.mxu0 0.0
      %681 = vmatpush1.msra.mxu0 0.0
      %682 = vmatprep.subr.mxu0 0.0
      %683 = vmatpush1.msra.mxu0 0.0
      %684 = vmatprep.mubr.f32.mxu0 0.0
      %v685 = vand.u32 %v445, 4294901760
      %v686 = vsub.f32 %v445, %v685
      %687 = vmatmul.mubr.f32.gmra.mrb[0].mxu0 %v686
      %v688 = vpop.f32.mrb[0].mxu0
      %v689 = vadd.f32 %v609, %v688
      %v690 = vpop.f32.mrb[0].mxu0
      %691 = vmatprep.mubr.f32.mxu0 0.0
      %v692 = vand.u32 %v448, 4294901760
      %v693 = vsub.f32 %v448, %v692
      %694 = vmatmul.mubr.f32.gmra.mrb[0].mxu0 %v693
      %v695 = vpop.f32.mrb[0].mxu0
      %v696 = vadd.f32 %v615, %v695
      %v697 = vpop.f32.mrb[0].mxu0
      %698 = vdwg.mxu0
      %699 = vmatprep.subr.mxu0 0.0
      %v700 = vand.u32 %v442, 4294901760
      %701 = vmatpush1.msra.mxu0 %v700
      %702 = vmatprep.subr.mxu0 0.0
      %703 = vmatpush1.msra.mxu0 0.0
      %704 = vmatprep.subr.mxu0 0.0
      %705 = vmatpush1.msra.mxu0 0.0
      %706 = vmatprep.subr.mxu0 0.0
      %707 = vmatpush1.msra.mxu0 0.0
      %708 = vmatprep.subr.mxu0 0.0
      %709 = vmatpush1.msra.mxu0 0.0
      %710 = vmatprep.subr.mxu0 0.0
      %711 = vmatpush1.msra.mxu0 0.0
      %712 = vmatprep.subr.mxu0 0.0
      %713 = vmatpush1.msra.mxu0 0.0
      %714 = vmatprep.subr.mxu0 0.0
      %715 = vmatpush1.msra.mxu0 0.0
      %716 = vmatprep.subr.mxu0 0.0
      %717 = vmatpush1.msra.mxu0 0.0
      %718 = vmatprep.subr.mxu0 0.0
      %719 = vmatpush1.msra.mxu0 0.0
      %720 = vmatprep.subr.mxu0 0.0
      %721 = vmatpush1.msra.mxu0 0.0
      %722 = vmatprep.subr.mxu0 0.0
      %723 = vmatpush1.msra.mxu0 0.0
      %724 = vmatprep.subr.mxu0 0.0
      %725 = vmatpush1.msra.mxu0 0.0
      %726 = vmatprep.subr.mxu0 0.0
      %727 = vmatpush1.msra.mxu0 0.0
      %728 = vmatprep.subr.mxu0 0.0
      %729 = vmatpush1.msra.mxu0 0.0
      %730 = vmatprep.subr.mxu0 0.0
      %731 = vmatpush1.msra.mxu0 0.0
      %732 = vmatprep.subr.mxu0 0.0
      %733 = vmatpush1.msra.mxu0 0.0
      %734 = vmatprep.subr.mxu0 0.0
      %735 = vmatpush1.msra.mxu0 0.0
      %736 = vmatprep.subr.mxu0 0.0
      %737 = vmatpush1.msra.mxu0 0.0
      %738 = vmatprep.subr.mxu0 0.0
      %739 = vmatpush1.msra.mxu0 0.0
      %740 = vmatprep.subr.mxu0 0.0
      %741 = vmatpush1.msra.mxu0 0.0
      %742 = vmatprep.subr.mxu0 0.0
      %743 = vmatpush1.msra.mxu0 0.0
      %744 = vmatprep.subr.mxu0 0.0
      %745 = vmatpush1.msra.mxu0 0.0
      %746 = vmatprep.subr.mxu0 0.0
      %747 = vmatpush1.msra.mxu0 0.0
      %748 = vmatprep.subr.mxu0 0.0
      %749 = vmatpush1.msra.mxu0 0.0
      %750 = vmatprep.subr.mxu0 0.0
      %751 = vmatpush1.msra.mxu0 0.0
      %752 = vmatprep.subr.mxu0 0.0
      %753 = vmatpush1.msra.mxu0 0.0
      %754 = vmatprep.subr.mxu0 0.0
      %755 = vmatpush1.msra.mxu0 0.0
      %756 = vmatprep.subr.mxu0 0.0
      %757 = vmatpush1.msra.mxu0 0.0
      %758 = vmatprep.subr.mxu0 0.0
      %759 = vmatpush1.msra.mxu0 0.0
      %760 = vmatprep.subr.mxu0 0.0
      %761 = vmatpush1.msra.mxu0 0.0
      %762 = vmatprep.subr.mxu0 0.0
      %763 = vmatpush1.msra.mxu0 0.0
      %764 = vmatprep.mubr.f32.mxu0 0.0
      %v765 = vand.u32 %v445, 4294901760
      %v766 = vsub.f32 %v445, %v765
      %v767 = vand.u32 %v766, 4294901760
      %768 = vmatmul.mubr.f32.gmra.mrb[0].mxu0 %v767
      %v769 = vpop.f32.mrb[0].mxu0
      %v770 = vadd.f32 %v689, %v769
      %v771 = vpop.f32.mrb[0].mxu0
      %772 = vmatprep.mubr.f32.mxu0 0.0
      %v773 = vand.u32 %v448, 4294901760
      %v774 = vsub.f32 %v448, %v773
      %v775 = vand.u32 %v774, 4294901760
      %776 = vmatmul.mubr.f32.gmra.mrb[0].mxu0 %v775
      %v777 = vpop.f32.mrb[0].mxu0
      %v778 = vadd.f32 %v696, %v777
      %v779 = vpop.f32.mrb[0].mxu0
      %780 = vdwg.mxu0
      %781 = vmatprep.subr.mxu0 0.0
      %v782 = vand.u32 %v442, 4294901760
      %v783 = vsub.f32 %v442, %v782
      %v784 = vand.u32 %v783, 4294901760
      %785 = vmatpush1.msra.mxu0 %v784
      %786 = vmatprep.subr.mxu0 0.0
      %787 = vmatpush1.msra.mxu0 0.0
      %788 = vmatprep.subr.mxu0 0.0
      %789 = vmatpush1.msra.mxu0 0.0
      %790 = vmatprep.subr.mxu0 0.0
      %791 = vmatpush1.msra.mxu0 0.0
      %792 = vmatprep.subr.mxu0 0.0
      %793 = vmatpush1.msra.mxu0 0.0
      %794 = vmatprep.subr.mxu0 0.0
      %795 = vmatpush1.msra.mxu0 0.0
      %796 = vmatprep.subr.mxu0 0.0
      %797 = vmatpush1.msra.mxu0 0.0
      %798 = vmatprep.subr.mxu0 0.0
      %799 = vmatpush1.msra.mxu0 0.0
      %800 = vmatprep.subr.mxu0 0.0
      %801 = vmatpush1.msra.mxu0 0.0
      %802 = vmatprep.subr.mxu0 0.0
      %803 = vmatpush1.msra.mxu0 0.0
      %804 = vmatprep.subr.mxu0 0.0
      %805 = vmatpush1.msra.mxu0 0.0
      %806 = vmatprep.subr.mxu0 0.0
      %807 = vmatpush1.msra.mxu0 0.0
      %808 = vmatprep.subr.mxu0 0.0
      %809 = vmatpush1.msra.mxu0 0.0
      %810 = vmatprep.subr.mxu0 0.0
      %811 = vmatpush1.msra.mxu0 0.0
      %812 = vmatprep.subr.mxu0 0.0
      %813 = vmatpush1.msra.mxu0 0.0
      %814 = vmatprep.subr.mxu0 0.0
      %815 = vmatpush1.msra.mxu0 0.0
      %816 = vmatprep.subr.mxu0 0.0
      %817 = vmatpush1.msra.mxu0 0.0
      %818 = vmatprep.subr.mxu0 0.0
      %819 = vmatpush1.msra.mxu0 0.0
      %820 = vmatprep.subr.mxu0 0.0
      %821 = vmatpush1.msra.mxu0 0.0
      %822 = vmatprep.subr.mxu0 0.0
      %823 = vmatpush1.msra.mxu0 0.0
      %824 = vmatprep.subr.mxu0 0.0
      %825 = vmatpush1.msra.mxu0 0.0
      %826 = vmatprep.subr.mxu0 0.0
      %827 = vmatpush1.msra.mxu0 0.0
      %828 = vmatprep.subr.mxu0 0.0
      %829 = vmatpush1.msra.mxu0 0.0
      %830 = vmatprep.subr.mxu0 0.0
      %831 = vmatpush1.msra.mxu0 0.0
      %832 = vmatprep.subr.mxu0 0.0
      %833 = vmatpush1.msra.mxu0 0.0
      %834 = vmatprep.subr.mxu0 0.0
      %835 = vmatpush1.msra.mxu0 0.0
      %836 = vmatprep.subr.mxu0 0.0
      %837 = vmatpush1.msra.mxu0 0.0
      %838 = vmatprep.subr.mxu0 0.0
      %839 = vmatpush1.msra.mxu0 0.0
      %840 = vmatprep.subr.mxu0 0.0
      %841 = vmatpush1.msra.mxu0 0.0
      %842 = vmatprep.subr.mxu0 0.0
      %843 = vmatpush1.msra.mxu0 0.0
      %844 = vmatprep.subr.mxu0 0.0
      %845 = vmatpush1.msra.mxu0 0.0
      %846 = vmatprep.subr.mxu0 0.0
      %847 = vmatpush1.msra.mxu0 0.0
      %848 = vmatprep.mubr.f32.mxu0 0.0
      %v849 = vand.u32 %v445, 4294901760
      %850 = vmatmul.mubr.f32.gmra.mrb[0].mxu0 %v849
      %v851 = vpop.f32.mrb[0].mxu0
      %v852 = vadd.f32 %v770, %v851
      %v853 = vpop.f32.mrb[0].mxu0
      %854 = vmatprep.mubr.f32.mxu0 0.0
      %v855 = vand.u32 %v448, 4294901760
      %856 = vmatmul.mubr.f32.gmra.mrb[0].mxu0 %v855
      %v857 = vpop.f32.mrb[0].mxu0
      %v858 = vadd.f32 %v778, %v857
      %v859 = vpop.f32.mrb[0].mxu0
      %860 = vdwg.mxu0
      %861 = vmatprep.subr.mxu0 0.0
      %v862 = vand.u32 %v442, 4294901760
      %863 = vmatpush1.msra.mxu0 %v862
      %864 = vmatprep.subr.mxu0 0.0
      %865 = vmatpush1.msra.mxu0 0.0
      %866 = vmatprep.subr.mxu0 0.0
      %867 = vmatpush1.msra.mxu0 0.0
      %868 = vmatprep.subr.mxu0 0.0
      %869 = vmatpush1.msra.mxu0 0.0
      %870 = vmatprep.subr.mxu0 0.0
      %871 = vmatpush1.msra.mxu0 0.0
      %872 = vmatprep.subr.mxu0 0.0
      %873 = vmatpush1.msra.mxu0 0.0
      %874 = vmatprep.subr.mxu0 0.0
      %875 = vmatpush1.msra.mxu0 0.0
      %876 = vmatprep.subr.mxu0 0.0
      %877 = vmatpush1.msra.mxu0 0.0
      %878 = vmatprep.subr.mxu0 0.0
      %879 = vmatpush1.msra.mxu0 0.0
      %880 = vmatprep.subr.mxu0 0.0
      %881 = vmatpush1.msra.mxu0 0.0
      %882 = vmatprep.subr.mxu0 0.0
      %883 = vmatpush1.msra.mxu0 0.0
      %884 = vmatprep.subr.mxu0 0.0
      %885 = vmatpush1.msra.mxu0 0.0
      %886 = vmatprep.subr.mxu0 0.0
      %887 = vmatpush1.msra.mxu0 0.0
      %888 = vmatprep.subr.mxu0 0.0
      %889 = vmatpush1.msra.mxu0 0.0
      %890 = vmatprep.subr.mxu0 0.0
      %891 = vmatpush1.msra.mxu0 0.0
      %892 = vmatprep.subr.mxu0 0.0
      %893 = vmatpush1.msra.mxu0 0.0
      %894 = vmatprep.subr.mxu0 0.0
      %895 = vmatpush1.msra.mxu0 0.0
      %896 = vmatprep.subr.mxu0 0.0
      %897 = vmatpush1.msra.mxu0 0.0
      %898 = vmatprep.subr.mxu0 0.0
      %899 = vmatpush1.msra.mxu0 0.0
      %900 = vmatprep.subr.mxu0 0.0
      %901 = vmatpush1.msra.mxu0 0.0
      %902 = vmatprep.subr.mxu0 0.0
      %903 = vmatpush1.msra.mxu0 0.0
      %904 = vmatprep.subr.mxu0 0.0
      %905 = vmatpush1.msra.mxu0 0.0
      %906 = vmatprep.subr.mxu0 0.0
      %907 = vmatpush1.msra.mxu0 0.0
      %908 = vmatprep.subr.mxu0 0.0
      %909 = vmatpush1.msra.mxu0 0.0
      %910 = vmatprep.subr.mxu0 0.0
      %911 = vmatpush1.msra.mxu0 0.0
      %912 = vmatprep.subr.mxu0 0.0
      %913 = vmatpush1.msra.mxu0 0.0
      %914 = vmatprep.subr.mxu0 0.0
      %915 = vmatpush1.msra.mxu0 0.0
      %916 = vmatprep.subr.mxu0 0.0
      %917 = vmatpush1.msra.mxu0 0.0
      %918 = vmatprep.subr.mxu0 0.0
      %919 = vmatpush1.msra.mxu0 0.0
      %920 = vmatprep.subr.mxu0 0.0
      %921 = vmatpush1.msra.mxu0 0.0
      %922 = vmatprep.subr.mxu0 0.0
      %923 = vmatpush1.msra.mxu0 0.0
      %924 = vmatprep.subr.mxu0 0.0
      %925 = vmatpush1.msra.mxu0 0.0
      %926 = vmatprep.mubr.f32.mxu0 0.0
      %v927 = vand.u32 %v445, 4294901760
      %928 = vmatmul.mubr.f32.gmra.mrb[0].mxu0 %v927
      %v929 = vpop.f32.mrb[0].mxu0
      %v930 = vadd.f32 %v852, %v929
      %v931 = vpop.f32.mrb[0].mxu0
      %932 = vmatprep.mubr.f32.mxu0 0.0
      %v933 = vand.u32 %v448, 4294901760
      %934 = vmatmul.mubr.f32.gmra.mrb[0].mxu0 %v933
      %v935 = vpop.f32.mrb[0].mxu0
      %v936 = vadd.f32 %v858, %v935
      %v937 = vpop.f32.mrb[0].mxu0
      %938 = vdwg.mxu0
      %vm939 = vcmp.gt.f32.partialorder %v930, 0.5
      %v940 = vsub.f32 %v368, %v930
      %v941 = vand.u32 2147483647, %v940
      %v943 = vrot.slane %v941, 1
      %v945 = vadd.f32 %v941, %v943
      %v946 = vrot.slane %v941, 2
      %v948 = vadd.f32 %v945, %v946
      %v949 = vrot.slane %v941, 3
      %v951 = vadd.f32 %v948, %v949
      %v953 = vrot.slane %v951, 4
      %v955 = vsel %vm939, %v953, 0.0
      %v957 = vrot.slane %v930, 6
      %v959 = vsub.f32 %v930, %v957
      %v961 = vrot.slane %v959, 1
      %v963 = vmul.f32 %v959, %v961
      %v965 = vrot.slane %v368, 6
      %v967 = vsub.f32 %v368, %v965
      %v969 = vrot.slane %v967, 1
      %v971 = vmul.f32 %v967, %v969
      %v972 = vmin.f32 %v930, %v368
      %v973 = vmax.f32 %v930, %v368
      %v975 = vrot.slane %v973, 6
      %v977 = vsub.f32 %v972, %v975
      %v978 = vmax.f32 %v977, 0.0
      %v980 = vrot.slane %v978, 1
      %v982 = vmul.f32 %v978, %v980
      %v983 = vadd.f32 %v963, %v971
      %v984 = vsub.f32 %v983, %v982
      %v985 = vrcp.pop %v984
      %v986 = vmul.f32 %v982, %v985
      %v988 = vrot.slane %v972, 6
      %v990 = vsub.f32 %v973, %v988
      %v991 = vmax.f32 %v990, 0.0
      %v993 = vrot.slane %v991, 1
      %v995 = vmul.f32 %v991, %v993
      %v996 = vsub.f32 %v995, %v984
      %v997 = vrcp.pop %v995
      %v998 = vmul.f32 %v996, %v997
      %v999 = vsub.f32 %v986, %v998
      %v1001 = vrot.slane %v999, 6
      %v1003 = vsel %vm939, %v1001, 1e+08
      %v1004 = vmul.f32 %v1003, 2.0
      %v1005 = vand.u32 2147483647, %v369
      %v1006 = vsub.f32 0.0, %v1005
      %v1007 = vmul.f32 %v1006, 1.442695
      %v1008 = vpow.pop %v1007
      %v1009 = vadd.f32 %v1008, 1.0
      %v1010 = vlog2.pop %v1009
      %v1011 = vmul.f32 %v1010, 0.6931472
      %v1012 = vmax.f32 %v369, 0.0
      %v1013 = vadd.f32 %v1012, %v1011
      %v1014 = vmul.f32 %v936, %v369
      %v1015 = vsub.f32 %v1013, %v1014
      %vm1016 = vcmp.ge.f32.partialorder %v369, 0.0
      %v1017 = vsel %vm1016, 1.0, %v1008
      %v1018 = vrcp.pop %v1009
      %v1019 = vmul.f32 %v1017, %v1018
      %v1020 = vmul.f32 %v1019, 2.0
      %v1021 = vsub.f32 1.0, %v1020
      %v1022 = vmul.f32 %v936, %v1021
      %v1023 = vadd.f32 %v1019, %v1022
      %v1024 = vmul.f32 %v1023, %v1023
      %v1025 = vmul.f32 %v936, -0.5
      %v1026 = vadd.f32 %v1025, 0.75
      %v1027 = vmul.f32 %v1026, %v1024
      %v1028 = vmul.f32 %v1027, %v1015
      %v1029 = vrot.slane %v1028, 4
      %v1030 = vadd.f32 %v1028, %v1029
      %v1031 = vrot.slane %v1030, 2
      %v1032 = vadd.f32 %v1030, %v1031
      %v1033 = vrot.slane %v1032, 1
      %v1034 = vadd.f32 %v1032, %v1033
      %v1035 = vrcp.pop 8.0
      %v1036 = vmul.f32 %v1034, %v1035
      %s1037 = smul.f32 %s363, 2.0
      %v1038 = vstv %s1037
      %v1039 = vmul.f32 %v1036, %v1038
      %v1041 = vrot.slane %v955, 3
      %v1044 = vrot.slane %v1004, 2
      %vm1046 = vcmask 1040384
      %v1047 = vsel %vm1046, %v1039, %v1041
      %vm1048 = vcmask 1041408
      %v1049 = vsel %vm1048, %v1047, %v1044
      %1050 = vst [vmem:[%s361] sm:$0x7] %v1049
      %p1051 = scmp.lt.s32.totalorder %s27, 1
      %s1052 = scalar_select %p1051, %s27, 1
      %p1053 = scmp.lt.s32.totalorder %s28, 1
      %s1054 = scalar_select %p1053, %s28, 1
      %s1055 = smul.addr %s1052, 2
      %s1056 = sadd.s32 %s1054, %s1055
      %s1057 = smul.addr %s1056, 4
      %s1058 = scalar_lea.vmem %s6, %s1057
      // Predicated region
      $region41: #{detection_losses_pallas.1} parent=39 // pred_check
        %p1059 = pneg %p191
      $region42: #{detection_losses_pallas.1} parent=39 // pred_check_branch
        %1061 = sbr.rel (%p1059) target = $region44
      $region43: #{detection_losses_pallas.1} parent=39 // pred_region
        _
      $region44: #{detection_losses_pallas.1} parent=39 // pred_fallthru
        _
    $region40: #{detection_losses_pallas.1} parent=5 // pred_fallthru
      _
    %p1062 = scmp.le.s32.totalorder 2, %s18
    // Predicated region
    $region45: #{detection_losses_pallas.1} parent=5 // pred_check
      %p1063 = pneg %p1062
    $region46: #{detection_losses_pallas.1} parent=5 // pred_check_branch
      %1065 = sbr.rel (%p1063) target = $region48
    $region47: #{detection_losses_pallas.1} parent=5 // pred_region
      %s1066 = ssub.s32 %s18, 2
      // Predicated region
      $region49: #{detection_losses_pallas.1} parent=47 // pred_check
        %p1067 = pneg %p197
      $region50: #{detection_losses_pallas.1} parent=47 // pred_check_branch
        %1069 = sbr.rel (%p1067) target = $region52
      $region51: #{detection_losses_pallas.1} parent=47 // pred_region
        %p1070 = scmp.lt.s32.totalorder %s29, 1
        %s1071 = scalar_select %p1070, %s29, 1
        %p1072 = scmp.lt.s32.totalorder %s30, 1
        %s1073 = scalar_select %p1072, %s30, 1
        %s1074 = smul.addr %s1071, 2
        %s1075 = sadd.s32 %s1073, %s1074
        %s1076 = smul.addr %s1075, 4
        %s1077 = scalar_lea.vmem %s6, %s1076
      $region52: #{detection_losses_pallas.1} parent=47 // pred_fallthru
        _
    $region48: #{detection_losses_pallas.1} parent=5 // pred_fallthru
      _
  $region6: #{detection_losses_pallas.1} parent=0 // loop_footer
    %s22 = sadd.s32 1, %s18
  $region7: #{detection_losses_pallas.1} parent=0 // loop_footer_branch
    %17 = sbr.rel target = $region3
  $region8: #{detection_losses_pallas.1} parent=0 // loop_exit
    _

</llo_original>
